<compile_context>
chip_gen: v5e
topology: v5e:2x2
jax: 0.10.0
libtpu: 0.0.40
codegen_flags: <defaults>
</compile_context>

<pallas_src>
import functools

import jax
import jax.numpy as jnp
from jax.experimental import pallas as pl
from jax.experimental.pallas import tpu as pltpu


C_PAD = 128        # lane-dense padded channel width for all activations/weights
NUM_LEVELS = 6     # TemporalConvNet(num_channels=[hidden_size] * 6), kernel_size=2


# ------------------------------- fused kernel -------------------------------

def _tcn_fused_kernel(x_ref, conv_w_ref, conv_b_ref, lin_w_ref, lin_b_ref, o_ref,
                      *, seq_len, dilations, has_downsample):
    """Whole TCN forward on a VMEM-resident [B*T, C_PAD] activation tile.

    x_ref      : [B*T, C_PAD]              input activations (channel padded)
    conv_w_ref : [2*L, 2*C_PAD, C_PAD]     merged-tap conv weights [W_{t-d} ; W_t]
    conv_b_ref : [2*L, 1, C_PAD]           conv biases
    lin_w_ref  : [3, C_PAD, C_PAD]         downsample(1x1), linear1, linear2
    lin_b_ref  : [3, 1, C_PAD]
    o_ref      : [B*T, C_PAD]              padded linear2 output (lane-dense store)
    """
    bt, cp = x_ref.shape
    f32 = jnp.float32

    # Position of each row inside its length-`seq_len` sequence (row = b*seq_len + t).
    t_idx = jax.lax.broadcasted_iota(jnp.int32, (bt, cp), 0) % seq_len

    def causal_conv_relu(h, d, idx):
        """relu([h[t-d] || h[t]] @ W + b), causal zero-pad, per sequence."""
        w = conv_w_ref[idx]                      # [2*cp, cp]
        b = conv_b_ref[idx]                      # [1, cp]
        if d >= seq_len:
            # The (t-d) tap never lands inside the sequence -> only current tap.
            acc = jnp.dot(h, w[cp:, :], preferred_element_type=f32)
        else:
            h_prev = pltpu.roll(h, shift=d, axis=0)        # row r <- row r-d (wraps)
            h_prev = jnp.where(t_idx < d, 0.0, h_prev)     # causal pad; kills batch wrap
            h_cat = jnp.concatenate([h_prev, h], axis=-1)  # [bt, 2*cp], lane-aligned
            acc = jnp.dot(h_cat, w, preferred_element_type=f32)
        return jnp.maximum(acc + b, 0.0)

    h = x_ref[...]
    for i, d in enumerate(dilations):
        # Residual path: 1x1 downsample conv only when channel counts differ.
        if i == 0 and has_downsample:
            res = jnp.dot(h, lin_w_ref[0], preferred_element_type=f32) + lin_b_ref[0]
        else:
            res = h
        h = causal_conv_relu(h, d, 2 * i)        # conv1 + chomp + relu
        h = causal_conv_relu(h, d, 2 * i + 1)    # conv2 + chomp + relu
        h = jnp.maximum(h + res, 0.0)            # residual add + block relu
        # TODO(synk): nn.Dropout(p=0.2) after each relu is identity at inference.

    # Fused head: linear1 + relu + linear2 (output written exactly once).
    y = jnp.maximum(jnp.dot(h, lin_w_ref[1], preferred_element_type=f32) + lin_b_ref[1], 0.0)
    o_ref[...] = jnp.dot(y, lin_w_ref[2], preferred_element_type=f32) + lin_b_ref[2]


# ------------------------------ wrapper / specs ------------------------------

def _full_vmem_spec(a):
    zeros = (0,) * a.ndim
    return pl.BlockSpec(a.shape, lambda zeros=zeros: zeros)


def tcn_forward(packed, x, lengths=None):
    """x: [batch, seq_len, input_size] -> [batch, seq_len, 2].

    `lengths` is accepted for signature parity with the PyTorch module but is
    unused by its forward pass (it only transposes, runs the TCN and the heads)."""
    del lengths
    B, T, Cin = x.shape
    BT = B * T
    x_p = jnp.pad(x, ((0, 0), (0, 0), (0, C_PAD - Cin))).reshape(BT, C_PAD)

    kernel = functools.partial(
        _tcn_fused_kernel,
        seq_len=T,
        dilations=packed["dilations"],
        has_downsample=packed["has_downsample"],
    )
    args = (x_p, packed["conv_w"], packed["conv_b"], packed["lin_w"], packed["lin_b"])
    out = pl.pallas_call(
        kernel,
        out_shape=jax.ShapeDtypeStruct((BT, C_PAD), jnp.float32),
        in_specs=[_full_vmem_spec(a) for a in args],
        out_specs=pl.BlockSpec((BT, C_PAD), lambda: (0, 0)),
    )(*args)
    n_out = packed["out_features"]
    return out[:, :n_out].reshape(B, T, n_out)


# ------------------------------ params / packing -----------------------------

def init_params(key, input_size, hidden_size, hidden_size2):
    keys = iter(jax.random.split(key, 8 * NUM_LEVELS + 8))

    def dense(shape, scale=0.1):
        return jax.random.normal(next(keys), shape, jnp.float32) * scale

    blocks = []
    in_c = input_size
    for i in range(NUM_LEVELS):
        # TODO(synk): weight_norm is a reparametrization; for this synthetic init
        # we model the effective (post-norm) weight directly.
        blk = {
            "dilation": 2 ** i,
            "conv1_w": dense((2, in_c, hidden_size)),       # [tap, Cin, Cout]
            "conv1_b": dense((hidden_size,)),
            "conv2_w": dense((2, hidden_size, hidden_size)),
            "conv2_b": dense((hidden_size,)),
            "downsample": None if in_c == hidden_size else {
                "w": dense((in_c, hidden_size)),
                "b": dense((hidden_size,)),
            },
        }
        blocks.append(blk)
        in_c = hidden_size

    return {
        "blocks": blocks,
        "linear1_w": dense((hidden_size, hidden_size2)),
        "linear1_b": dense((hidden_size2,)),
        "linear2_w": dense((hidden_size2, 2)),
        "linear2_b": dense((2,)),
    }


def _pad_mat(w):
    assert w.shape[0] <= C_PAD and w.shape[1] <= C_PAD
    return jnp.pad(w, ((0, C_PAD - w.shape[0]), (0, C_PAD - w.shape[1])))


def _pad_vec(b):
    assert b.shape[0] <= C_PAD
    return jnp.pad(b, (0, C_PAD - b.shape[0])).reshape(1, C_PAD)


def pack_params(params):
    """Pad all channel dims to C_PAD lanes, merge the two conv taps along the
    contraction axis, and stack per-layer weights so the kernel takes 5 arrays."""
    conv_w, conv_b = [], []
    for blk in params["blocks"]:
        for w, b in ((blk["conv1_w"], blk["conv1_b"]),
                     (blk["conv2_w"], blk["conv2_b"])):
            # [W_{t-d} ; W_t] stacked along K so both taps are one MXU matmul.
            conv_w.append(jnp.concatenate([_pad_mat(w[0]), _pad_mat(w[1])], axis=0))
            conv_b.append(_pad_vec(b))

    ds = params["blocks"][0]["downsample"]
    if ds is not None:
        ds_w, ds_b = _pad_mat(ds["w"]), _pad_vec(ds["b"])
    else:
        ds_w = jnp.zeros((C_PAD, C_PAD), jnp.float32)
        ds_b = jnp.zeros((1, C_PAD), jnp.float32)

    return {
        "conv_w": jnp.stack(conv_w),                               # [2L, 2*C_PAD, C_PAD]
        "conv_b": jnp.stack(conv_b),                               # [2L, 1, C_PAD]
        "lin_w": jnp.stack([ds_w, _pad_mat(params["linear1_w"]),
                            _pad_mat(params["linear2_w"])]),       # [3, C_PAD, C_PAD]
        "lin_b": jnp.stack([ds_b, _pad_vec(params["linear1_b"]),
                            _pad_vec(params["linear2_b"])]),       # [3, 1, C_PAD]
        "dilations": tuple(blk["dilation"] for blk in params["blocks"]),
        "has_downsample": ds is not None,
        "out_features": params["linear2_w"].shape[1],
    }


# ------------------------------ pure-JAX reference ---------------------------

def tcn_reference(params, x):
    """Pure-JAX mirror of the PyTorch TCN.forward (numerics check only)."""
    prec = jax.lax.Precision.HIGHEST

    def mm(a, w):  # [B,T,Ci] x [Ci,Co]
        return jnp.einsum("btc,co->bto", a, w, precision=prec)

    def causal_conv(inp, w, b, d):
        T = inp.shape[1]
        prev = jnp.pad(inp, ((0, 0), (d, 0), (0, 0)))[:, :T, :]   # pad + chomp
        return mm(prev, w[0]) + mm(inp, w[1]) + b

    h = x
    for blk in params["blocks"]:
        d = blk["dilation"]
        if blk["downsample"] is None:
            res = h
        else:
            res = mm(h, blk["downsample"]["w"]) + blk["downsample"]["b"]
        h1 = jax.nn.relu(causal_conv(h, blk["conv1_w"], blk["conv1_b"], d))
        h2 = jax.nn.relu(causal_conv(h1, blk["conv2_w"], blk["conv2_b"], d))
        h = jax.nn.relu(h2 + res)
    y = jax.nn.relu(mm(h, params["linear1_w"]) + params["linear1_b"])
    return mm(y, params["linear2_w"]) + params["linear2_b"]


# ---------------------------------- main -------------------------------------

if __name__ == "__main__":
    batch, seq_len = 2, 16
    input_size, hidden_size, hidden_size2 = 8, 32, 16

    key = jax.random.PRNGKey(0)
    k_params, k_x = jax.random.split(key)

    params = init_params(k_params, input_size, hidden_size, hidden_size2)
    packed = pack_params(params)

    x = jax.random.normal(k_x, (batch, seq_len, input_size), jnp.float32)
    lengths = jnp.full((batch,), seq_len, jnp.int32)   # unused by forward (parity)

    fwd = jax.jit(functools.partial(tcn_forward, packed))
    out = jax.block_until_ready(fwd(x, lengths))
    assert out.shape == (batch, seq_len, 2), out.shape

    # Numerics check against a pure-JAX mirror of the PyTorch forward.
    ref = tcn_reference(params, x)
    max_err = float(jnp.max(jnp.abs(out - ref)))
    assert max_err < 5e-2, f"max |pallas - reference| = {max_err}"

    print("KERNEL_OK")
</pallas_src>

<mosaic_0001>
module attributes {stable_mosaic.version = 11 : i64} {
  func.func @_tcn_fused_kernel(%arg0: memref<32x128xf32, #tpu.memory_space<vmem>>, %arg1: memref<12x256x128xf32, #tpu.memory_space<vmem>>, %arg2: memref<12x1x128xf32, #tpu.memory_space<vmem>>, %arg3: memref<3x128x128xf32, #tpu.memory_space<vmem>>, %arg4: memref<3x1x128xf32, #tpu.memory_space<vmem>>, %arg5: memref<32x128xf32, #tpu.memory_space<vmem>>) attributes {dimension_semantics = [], scalar_prefetch = 0 : i64, scratch_operands = 0 : i64, tpu.core_type = #tpu.core_type<tc>} {
    %0 = tpu.iota {dimensions = array<i32: 0>} : vector<32x128xi32>
    %c16_i32 = arith.constant 16 : i32
    %c0_i32 = arith.constant 0 : i32
    %1 = arith.cmpi eq, %c16_i32, %c0_i32 : i32
    %c1_i32 = arith.constant 1 : i32
    %2 = arith.select %1, %c1_i32, %c16_i32 : i32
    %3 = vector.broadcast %2 : i32 to vector<32x128xi32>
    %4 = arith.remsi %0, %3 : vector<32x128xi32>
    %c0_i32_0 = arith.constant 0 : i32
    %5 = vector.broadcast %c0_i32_0 : i32 to vector<32x128xi32>
    %6 = arith.cmpi ne, %4, %5 : vector<32x128xi32>
    %c0_i32_1 = arith.constant 0 : i32
    %7 = vector.broadcast %c0_i32_1 : i32 to vector<32x128xi32>
    %8 = arith.cmpi slt, %4, %7 : vector<32x128xi32>
    %c0_i32_2 = arith.constant 0 : i32
    %9 = arith.cmpi slt, %2, %c0_i32_2 : i32
    %10 = vector.broadcast %9 : i1 to vector<32x128xi1>
    %11 = vector.broadcast %10 : vector<32x128xi1> to vector<32x128xi1>
    %12 = arith.xori %8, %11 : vector<32x128xi1>
    %13 = arith.andi %12, %6 : vector<32x128xi1>
    %14 = vector.broadcast %2 : i32 to vector<32x128xi32>
    %15 = arith.addi %4, %14 : vector<32x128xi32>
    %16 = arith.select %13, %15, %4 : vector<32x128xi1>, vector<32x128xi32>
    %c0 = arith.constant 0 : index
    %c0_3 = arith.constant 0 : index
    %17 = vector.load %arg0[%c0, %c0_3] : memref<32x128xf32, #tpu.memory_space<vmem>>, vector<32x128xf32>
    %c0_4 = arith.constant 0 : index
    %c0_5 = arith.constant 0 : index
    %c0_6 = arith.constant 0 : index
    %18 = vector.load %arg3[%c0_4, %c0_5, %c0_6] : memref<3x128x128xf32, #tpu.memory_space<vmem>>, vector<1x128x128xf32>
    %19 = vector.shape_cast %18 : vector<1x128x128xf32> to vector<128x128xf32>
    %cst = arith.constant dense<0.000000e+00> : vector<32x128xf32>
    %20 = tpu.matmul %17, %19, %cst {dimension_numbers = #tpu.dot_dimension_numbers<[1], [0], [0], [1], [0, 0, 1, 1], [], []>} : vector<32x128xf32>, vector<128x128xf32>, vector<32x128xf32> -> vector<32x128xf32>
    %c0_7 = arith.constant 0 : index
    %c0_8 = arith.constant 0 : index
    %c0_9 = arith.constant 0 : index
    %21 = vector.load %arg4[%c0_7, %c0_8, %c0_9] : memref<3x1x128xf32, #tpu.memory_space<vmem>>, vector<1x1x128xf32>
    %22 = vector.shape_cast %21 : vector<1x1x128xf32> to vector<1x128xf32>
    %23 = vector.broadcast %22 : vector<1x128xf32> to vector<32x128xf32>
    %24 = arith.addf %20, %23 : vector<32x128xf32>
    %c0_10 = arith.constant 0 : index
    %c0_11 = arith.constant 0 : index
    %c0_12 = arith.constant 0 : index
    %25 = vector.load %arg1[%c0_10, %c0_11, %c0_12] : memref<12x256x128xf32, #tpu.memory_space<vmem>>, vector<1x256x128xf32>
    %26 = vector.shape_cast %25 : vector<1x256x128xf32> to vector<256x128xf32>
    %c0_13 = arith.constant 0 : index
    %c0_14 = arith.constant 0 : index
    %c0_15 = arith.constant 0 : index
    %27 = vector.load %arg2[%c0_13, %c0_14, %c0_15] : memref<12x1x128xf32, #tpu.memory_space<vmem>>, vector<1x1x128xf32>
    %28 = vector.shape_cast %27 : vector<1x1x128xf32> to vector<1x128xf32>
    %c1_i32_16 = arith.constant 1 : i32
    %29 = tpu.dynamic_rotate %17 by %c1_i32_16 dim 0 : vector<32x128xf32>, i32 -> vector<32x128xf32>
    %c1_i32_17 = arith.constant 1 : i32
    %30 = vector.broadcast %c1_i32_17 : i32 to vector<32x128xi32>
    %31 = arith.cmpi slt, %16, %30 : vector<32x128xi32>
    %cst_18 = arith.constant 0.000000e+00 : f32
    %32 = vector.broadcast %cst_18 : f32 to vector<32x128xf32>
    %33 = arith.select %31, %32, %29 : vector<32x128xi1>, vector<32x128xf32>
    %34 = tpu.concatenate %33, %17 in 1 : vector<32x128xf32>, vector<32x128xf32> -> vector<32x256xf32>
    %cst_19 = arith.constant dense<0.000000e+00> : vector<32x128xf32>
    %35 = tpu.matmul %34, %26, %cst_19 {dimension_numbers = #tpu.dot_dimension_numbers<[1], [0], [0], [1], [0, 0, 1, 1], [], []>} : vector<32x256xf32>, vector<256x128xf32>, vector<32x128xf32> -> vector<32x128xf32>
    %36 = vector.broadcast %28 : vector<1x128xf32> to vector<32x128xf32>
    %37 = arith.addf %35, %36 : vector<32x128xf32>
    %cst_20 = arith.constant 0.000000e+00 : f32
    %38 = vector.broadcast %cst_20 : f32 to vector<32x128xf32>
    %39 = arith.maximumf %37, %38 : vector<32x128xf32>
    %c1 = arith.constant 1 : index
    %c0_21 = arith.constant 0 : index
    %c0_22 = arith.constant 0 : index
    %40 = vector.load %arg1[%c1, %c0_21, %c0_22] : memref<12x256x128xf32, #tpu.memory_space<vmem>>, vector<1x256x128xf32>
    %41 = vector.shape_cast %40 : vector<1x256x128xf32> to vector<256x128xf32>
    %c1_23 = arith.constant 1 : index
    %c0_24 = arith.constant 0 : index
    %c0_25 = arith.constant 0 : index
    %42 = vector.load %arg2[%c1_23, %c0_24, %c0_25] : memref<12x1x128xf32, #tpu.memory_space<vmem>>, vector<1x1x128xf32>
    %43 = vector.shape_cast %42 : vector<1x1x128xf32> to vector<1x128xf32>
    %c1_i32_26 = arith.constant 1 : i32
    %44 = tpu.dynamic_rotate %39 by %c1_i32_26 dim 0 : vector<32x128xf32>, i32 -> vector<32x128xf32>
    %c1_i32_27 = arith.constant 1 : i32
    %45 = vector.broadcast %c1_i32_27 : i32 to vector<32x128xi32>
    %46 = arith.cmpi slt, %16, %45 : vector<32x128xi32>
    %cst_28 = arith.constant 0.000000e+00 : f32
    %47 = vector.broadcast %cst_28 : f32 to vector<32x128xf32>
    %48 = arith.select %46, %47, %44 : vector<32x128xi1>, vector<32x128xf32>
    %49 = tpu.concatenate %48, %39 in 1 : vector<32x128xf32>, vector<32x128xf32> -> vector<32x256xf32>
    %cst_29 = arith.constant dense<0.000000e+00> : vector<32x128xf32>
    %50 = tpu.matmul %49, %41, %cst_29 {dimension_numbers = #tpu.dot_dimension_numbers<[1], [0], [0], [1], [0, 0, 1, 1], [], []>} : vector<32x256xf32>, vector<256x128xf32>, vector<32x128xf32> -> vector<32x128xf32>
    %51 = vector.broadcast %43 : vector<1x128xf32> to vector<32x128xf32>
    %52 = arith.addf %50, %51 : vector<32x128xf32>
    %cst_30 = arith.constant 0.000000e+00 : f32
    %53 = vector.broadcast %cst_30 : f32 to vector<32x128xf32>
    %54 = arith.maximumf %52, %53 : vector<32x128xf32>
    %55 = arith.addf %54, %24 : vector<32x128xf32>
    %cst_31 = arith.constant 0.000000e+00 : f32
    %56 = vector.broadcast %cst_31 : f32 to vector<32x128xf32>
    %57 = arith.maximumf %55, %56 : vector<32x128xf32>
    %c2 = arith.constant 2 : index
    %c0_32 = arith.constant 0 : index
    %c0_33 = arith.constant 0 : index
    %58 = vector.load %arg1[%c2, %c0_32, %c0_33] : memref<12x256x128xf32, #tpu.memory_space<vmem>>, vector<1x256x128xf32>
    %59 = vector.shape_cast %58 : vector<1x256x128xf32> to vector<256x128xf32>
    %c2_34 = arith.constant 2 : index
    %c0_35 = arith.constant 0 : index
    %c0_36 = arith.constant 0 : index
    %60 = vector.load %arg2[%c2_34, %c0_35, %c0_36] : memref<12x1x128xf32, #tpu.memory_space<vmem>>, vector<1x1x128xf32>
    %61 = vector.shape_cast %60 : vector<1x1x128xf32> to vector<1x128xf32>
    %c2_i32 = arith.constant 2 : i32
    %62 = tpu.dynamic_rotate %57 by %c2_i32 dim 0 : vector<32x128xf32>, i32 -> vector<32x128xf32>
    %c2_i32_37 = arith.constant 2 : i32
    %63 = vector.broadcast %c2_i32_37 : i32 to vector<32x128xi32>
    %64 = arith.cmpi slt, %16, %63 : vector<32x128xi32>
    %cst_38 = arith.constant 0.000000e+00 : f32
    %65 = vector.broadcast %cst_38 : f32 to vector<32x128xf32>
    %66 = arith.select %64, %65, %62 : vector<32x128xi1>, vector<32x128xf32>
    %67 = tpu.concatenate %66, %57 in 1 : vector<32x128xf32>, vector<32x128xf32> -> vector<32x256xf32>
    %cst_39 = arith.constant dense<0.000000e+00> : vector<32x128xf32>
    %68 = tpu.matmul %67, %59, %cst_39 {dimension_numbers = #tpu.dot_dimension_numbers<[1], [0], [0], [1], [0, 0, 1, 1], [], []>} : vector<32x256xf32>, vector<256x128xf32>, vector<32x128xf32> -> vector<32x128xf32>
    %69 = vector.broadcast %61 : vector<1x128xf32> to vector<32x128xf32>
    %70 = arith.addf %68, %69 : vector<32x128xf32>
    %cst_40 = arith.constant 0.000000e+00 : f32
    %71 = vector.broadcast %cst_40 : f32 to vector<32x128xf32>
    %72 = arith.maximumf %70, %71 : vector<32x128xf32>
    %c3 = arith.constant 3 : index
    %c0_41 = arith.constant 0 : index
    %c0_42 = arith.constant 0 : index
    %73 = vector.load %arg1[%c3, %c0_41, %c0_42] : memref<12x256x128xf32, #tpu.memory_space<vmem>>, vector<1x256x128xf32>
    %74 = vector.shape_cast %73 : vector<1x256x128xf32> to vector<256x128xf32>
    %c3_43 = arith.constant 3 : index
    %c0_44 = arith.constant 0 : index
    %c0_45 = arith.constant 0 : index
    %75 = vector.load %arg2[%c3_43, %c0_44, %c0_45] : memref<12x1x128xf32, #tpu.memory_space<vmem>>, vector<1x1x128xf32>
    %76 = vector.shape_cast %75 : vector<1x1x128xf32> to vector<1x128xf32>
    %c2_i32_46 = arith.constant 2 : i32
    %77 = tpu.dynamic_rotate %72 by %c2_i32_46 dim 0 : vector<32x128xf32>, i32 -> vector<32x128xf32>
    %c2_i32_47 = arith.constant 2 : i32
    %78 = vector.broadcast %c2_i32_47 : i32 to vector<32x128xi32>
    %79 = arith.cmpi slt, %16, %78 : vector<32x128xi32>
    %cst_48 = arith.constant 0.000000e+00 : f32
    %80 = vector.broadcast %cst_48 : f32 to vector<32x128xf32>
    %81 = arith.select %79, %80, %77 : vector<32x128xi1>, vector<32x128xf32>
    %82 = tpu.concatenate %81, %72 in 1 : vector<32x128xf32>, vector<32x128xf32> -> vector<32x256xf32>
    %cst_49 = arith.constant dense<0.000000e+00> : vector<32x128xf32>
    %83 = tpu.matmul %82, %74, %cst_49 {dimension_numbers = #tpu.dot_dimension_numbers<[1], [0], [0], [1], [0, 0, 1, 1], [], []>} : vector<32x256xf32>, vector<256x128xf32>, vector<32x128xf32> -> vector<32x128xf32>
    %84 = vector.broadcast %76 : vector<1x128xf32> to vector<32x128xf32>
    %85 = arith.addf %83, %84 : vector<32x128xf32>
    %cst_50 = arith.constant 0.000000e+00 : f32
    %86 = vector.broadcast %cst_50 : f32 to vector<32x128xf32>
    %87 = arith.maximumf %85, %86 : vector<32x128xf32>
    %88 = arith.addf %87, %57 : vector<32x128xf32>
    %cst_51 = arith.constant 0.000000e+00 : f32
    %89 = vector.broadcast %cst_51 : f32 to vector<32x128xf32>
    %90 = arith.maximumf %88, %89 : vector<32x128xf32>
    %c4 = arith.constant 4 : index
    %c0_52 = arith.constant 0 : index
    %c0_53 = arith.constant 0 : index
    %91 = vector.load %arg1[%c4, %c0_52, %c0_53] : memref<12x256x128xf32, #tpu.memory_space<vmem>>, vector<1x256x128xf32>
    %92 = vector.shape_cast %91 : vector<1x256x128xf32> to vector<256x128xf32>
    %c4_54 = arith.constant 4 : index
    %c0_55 = arith.constant 0 : index
    %c0_56 = arith.constant 0 : index
    %93 = vector.load %arg2[%c4_54, %c0_55, %c0_56] : memref<12x1x128xf32, #tpu.memory_space<vmem>>, vector<1x1x128xf32>
    %94 = vector.shape_cast %93 : vector<1x1x128xf32> to vector<1x128xf32>
    %c4_i32 = arith.constant 4 : i32
    %95 = tpu.dynamic_rotate %90 by %c4_i32 dim 0 : vector<32x128xf32>, i32 -> vector<32x128xf32>
    %c4_i32_57 = arith.constant 4 : i32
    %96 = vector.broadcast %c4_i32_57 : i32 to vector<32x128xi32>
    %97 = arith.cmpi slt, %16, %96 : vector<32x128xi32>
    %cst_58 = arith.constant 0.000000e+00 : f32
    %98 = vector.broadcast %cst_58 : f32 to vector<32x128xf32>
    %99 = arith.select %97, %98, %95 : vector<32x128xi1>, vector<32x128xf32>
    %100 = tpu.concatenate %99, %90 in 1 : vector<32x128xf32>, vector<32x128xf32> -> vector<32x256xf32>
    %cst_59 = arith.constant dense<0.000000e+00> : vector<32x128xf32>
    %101 = tpu.matmul %100, %92, %cst_59 {dimension_numbers = #tpu.dot_dimension_numbers<[1], [0], [0], [1], [0, 0, 1, 1], [], []>} : vector<32x256xf32>, vector<256x128xf32>, vector<32x128xf32> -> vector<32x128xf32>
    %102 = vector.broadcast %94 : vector<1x128xf32> to vector<32x128xf32>
    %103 = arith.addf %101, %102 : vector<32x128xf32>
    %cst_60 = arith.constant 0.000000e+00 : f32
    %104 = vector.broadcast %cst_60 : f32 to vector<32x128xf32>
    %105 = arith.maximumf %103, %104 : vector<32x128xf32>
    %c5 = arith.constant 5 : index
    %c0_61 = arith.constant 0 : index
    %c0_62 = arith.constant 0 : index
    %106 = vector.load %arg1[%c5, %c0_61, %c0_62] : memref<12x256x128xf32, #tpu.memory_space<vmem>>, vector<1x256x128xf32>
    %107 = vector.shape_cast %106 : vector<1x256x128xf32> to vector<256x128xf32>
    %c5_63 = arith.constant 5 : index
    %c0_64 = arith.constant 0 : index
    %c0_65 = arith.constant 0 : index
    %108 = vector.load %arg2[%c5_63, %c0_64, %c0_65] : memref<12x1x128xf32, #tpu.memory_space<vmem>>, vector<1x1x128xf32>
    %109 = vector.shape_cast %108 : vector<1x1x128xf32> to vector<1x128xf32>
    %c4_i32_66 = arith.constant 4 : i32
    %110 = tpu.dynamic_rotate %105 by %c4_i32_66 dim 0 : vector<32x128xf32>, i32 -> vector<32x128xf32>
    %c4_i32_67 = arith.constant 4 : i32
    %111 = vector.broadcast %c4_i32_67 : i32 to vector<32x128xi32>
    %112 = arith.cmpi slt, %16, %111 : vector<32x128xi32>
    %cst_68 = arith.constant 0.000000e+00 : f32
    %113 = vector.broadcast %cst_68 : f32 to vector<32x128xf32>
    %114 = arith.select %112, %113, %110 : vector<32x128xi1>, vector<32x128xf32>
    %115 = tpu.concatenate %114, %105 in 1 : vector<32x128xf32>, vector<32x128xf32> -> vector<32x256xf32>
    %cst_69 = arith.constant dense<0.000000e+00> : vector<32x128xf32>
    %116 = tpu.matmul %115, %107, %cst_69 {dimension_numbers = #tpu.dot_dimension_numbers<[1], [0], [0], [1], [0, 0, 1, 1], [], []>} : vector<32x256xf32>, vector<256x128xf32>, vector<32x128xf32> -> vector<32x128xf32>
    %117 = vector.broadcast %109 : vector<1x128xf32> to vector<32x128xf32>
    %118 = arith.addf %116, %117 : vector<32x128xf32>
    %cst_70 = arith.constant 0.000000e+00 : f32
    %119 = vector.broadcast %cst_70 : f32 to vector<32x128xf32>
    %120 = arith.maximumf %118, %119 : vector<32x128xf32>
    %121 = arith.addf %120, %90 : vector<32x128xf32>
    %cst_71 = arith.constant 0.000000e+00 : f32
    %122 = vector.broadcast %cst_71 : f32 to vector<32x128xf32>
    %123 = arith.maximumf %121, %122 : vector<32x128xf32>
    %c6 = arith.constant 6 : index
    %c0_72 = arith.constant 0 : index
    %c0_73 = arith.constant 0 : index
    %124 = vector.load %arg1[%c6, %c0_72, %c0_73] : memref<12x256x128xf32, #tpu.memory_space<vmem>>, vector<1x256x128xf32>
    %125 = vector.shape_cast %124 : vector<1x256x128xf32> to vector<256x128xf32>
    %c6_74 = arith.constant 6 : index
    %c0_75 = arith.constant 0 : index
    %c0_76 = arith.constant 0 : index
    %126 = vector.load %arg2[%c6_74, %c0_75, %c0_76] : memref<12x1x128xf32, #tpu.memory_space<vmem>>, vector<1x1x128xf32>
    %127 = vector.shape_cast %126 : vector<1x1x128xf32> to vector<1x128xf32>
    %c8_i32 = arith.constant 8 : i32
    %128 = tpu.dynamic_rotate %123 by %c8_i32 dim 0 : vector<32x128xf32>, i32 -> vector<32x128xf32>
    %c8_i32_77 = arith.constant 8 : i32
    %129 = vector.broadcast %c8_i32_77 : i32 to vector<32x128xi32>
    %130 = arith.cmpi slt, %16, %129 : vector<32x128xi32>
    %cst_78 = arith.constant 0.000000e+00 : f32
    %131 = vector.broadcast %cst_78 : f32 to vector<32x128xf32>
    %132 = arith.select %130, %131, %128 : vector<32x128xi1>, vector<32x128xf32>
    %133 = tpu.concatenate %132, %123 in 1 : vector<32x128xf32>, vector<32x128xf32> -> vector<32x256xf32>
    %cst_79 = arith.constant dense<0.000000e+00> : vector<32x128xf32>
    %134 = tpu.matmul %133, %125, %cst_79 {dimension_numbers = #tpu.dot_dimension_numbers<[1], [0], [0], [1], [0, 0, 1, 1], [], []>} : vector<32x256xf32>, vector<256x128xf32>, vector<32x128xf32> -> vector<32x128xf32>
    %135 = vector.broadcast %127 : vector<1x128xf32> to vector<32x128xf32>
    %136 = arith.addf %134, %135 : vector<32x128xf32>
    %cst_80 = arith.constant 0.000000e+00 : f32
    %137 = vector.broadcast %cst_80 : f32 to vector<32x128xf32>
    %138 = arith.maximumf %136, %137 : vector<32x128xf32>
    %c7 = arith.constant 7 : index
    %c0_81 = arith.constant 0 : index
    %c0_82 = arith.constant 0 : index
    %139 = vector.load %arg1[%c7, %c0_81, %c0_82] : memref<12x256x128xf32, #tpu.memory_space<vmem>>, vector<1x256x128xf32>
    %140 = vector.shape_cast %139 : vector<1x256x128xf32> to vector<256x128xf32>
    %c7_83 = arith.constant 7 : index
    %c0_84 = arith.constant 0 : index
    %c0_85 = arith.constant 0 : index
    %141 = vector.load %arg2[%c7_83, %c0_84, %c0_85] : memref<12x1x128xf32, #tpu.memory_space<vmem>>, vector<1x1x128xf32>
    %142 = vector.shape_cast %141 : vector<1x1x128xf32> to vector<1x128xf32>
    %c8_i32_86 = arith.constant 8 : i32
    %143 = tpu.dynamic_rotate %138 by %c8_i32_86 dim 0 : vector<32x128xf32>, i32 -> vector<32x128xf32>
    %c8_i32_87 = arith.constant 8 : i32
    %144 = vector.broadcast %c8_i32_87 : i32 to vector<32x128xi32>
    %145 = arith.cmpi slt, %16, %144 : vector<32x128xi32>
    %cst_88 = arith.constant 0.000000e+00 : f32
    %146 = vector.broadcast %cst_88 : f32 to vector<32x128xf32>
    %147 = arith.select %145, %146, %143 : vector<32x128xi1>, vector<32x128xf32>
    %148 = tpu.concatenate %147, %138 in 1 : vector<32x128xf32>, vector<32x128xf32> -> vector<32x256xf32>
    %cst_89 = arith.constant dense<0.000000e+00> : vector<32x128xf32>
    %149 = tpu.matmul %148, %140, %cst_89 {dimension_numbers = #tpu.dot_dimension_numbers<[1], [0], [0], [1], [0, 0, 1, 1], [], []>} : vector<32x256xf32>, vector<256x128xf32>, vector<32x128xf32> -> vector<32x128xf32>
    %150 = vector.broadcast %142 : vector<1x128xf32> to vector<32x128xf32>
    %151 = arith.addf %149, %150 : vector<32x128xf32>
    %cst_90 = arith.constant 0.000000e+00 : f32
    %152 = vector.broadcast %cst_90 : f32 to vector<32x128xf32>
    %153 = arith.maximumf %151, %152 : vector<32x128xf32>
    %154 = arith.addf %153, %123 : vector<32x128xf32>
    %cst_91 = arith.constant 0.000000e+00 : f32
    %155 = vector.broadcast %cst_91 : f32 to vector<32x128xf32>
    %156 = arith.maximumf %154, %155 : vector<32x128xf32>
    %c8 = arith.constant 8 : index
    %c0_92 = arith.constant 0 : index
    %c0_93 = arith.constant 0 : index
    %157 = vector.load %arg1[%c8, %c0_92, %c0_93] : memref<12x256x128xf32, #tpu.memory_space<vmem>>, vector<1x256x128xf32>
    %158 = vector.shape_cast %157 : vector<1x256x128xf32> to vector<256x128xf32>
    %c8_94 = arith.constant 8 : index
    %c0_95 = arith.constant 0 : index
    %c0_96 = arith.constant 0 : index
    %159 = vector.load %arg2[%c8_94, %c0_95, %c0_96] : memref<12x1x128xf32, #tpu.memory_space<vmem>>, vector<1x1x128xf32>
    %160 = vector.shape_cast %159 : vector<1x1x128xf32> to vector<1x128xf32>
    %161 = vector.extract_strided_slice %158 {offsets = [128, 0], sizes = [128, 128], strides = [1, 1]} : vector<256x128xf32> to vector<128x128xf32>
    %cst_97 = arith.constant dense<0.000000e+00> : vector<32x128xf32>
    %162 = tpu.matmul %156, %161, %cst_97 {dimension_numbers = #tpu.dot_dimension_numbers<[1], [0], [0], [1], [0, 0, 1, 1], [], []>} : vector<32x128xf32>, vector<128x128xf32>, vector<32x128xf32> -> vector<32x128xf32>
    %163 = vector.broadcast %160 : vector<1x128xf32> to vector<32x128xf32>
    %164 = arith.addf %162, %163 : vector<32x128xf32>
    %cst_98 = arith.constant 0.000000e+00 : f32
    %165 = vector.broadcast %cst_98 : f32 to vector<32x128xf32>
    %166 = arith.maximumf %164, %165 : vector<32x128xf32>
    %c9 = arith.constant 9 : index
    %c0_99 = arith.constant 0 : index
    %c0_100 = arith.constant 0 : index
    %167 = vector.load %arg1[%c9, %c0_99, %c0_100] : memref<12x256x128xf32, #tpu.memory_space<vmem>>, vector<1x256x128xf32>
    %168 = vector.shape_cast %167 : vector<1x256x128xf32> to vector<256x128xf32>
    %c9_101 = arith.constant 9 : index
    %c0_102 = arith.constant 0 : index
    %c0_103 = arith.constant 0 : index
    %169 = vector.load %arg2[%c9_101, %c0_102, %c0_103] : memref<12x1x128xf32, #tpu.memory_space<vmem>>, vector<1x1x128xf32>
    %170 = vector.shape_cast %169 : vector<1x1x128xf32> to vector<1x128xf32>
    %171 = vector.extract_strided_slice %168 {offsets = [128, 0], sizes = [128, 128], strides = [1, 1]} : vector<256x128xf32> to vector<128x128xf32>
    %cst_104 = arith.constant dense<0.000000e+00> : vector<32x128xf32>
    %172 = tpu.matmul %166, %171, %cst_104 {dimension_numbers = #tpu.dot_dimension_numbers<[1], [0], [0], [1], [0, 0, 1, 1], [], []>} : vector<32x128xf32>, vector<128x128xf32>, vector<32x128xf32> -> vector<32x128xf32>
    %173 = vector.broadcast %170 : vector<1x128xf32> to vector<32x128xf32>
    %174 = arith.addf %172, %173 : vector<32x128xf32>
    %cst_105 = arith.constant 0.000000e+00 : f32
    %175 = vector.broadcast %cst_105 : f32 to vector<32x128xf32>
    %176 = arith.maximumf %174, %175 : vector<32x128xf32>
    %177 = arith.addf %176, %156 : vector<32x128xf32>
    %cst_106 = arith.constant 0.000000e+00 : f32
    %178 = vector.broadcast %cst_106 : f32 to vector<32x128xf32>
    %179 = arith.maximumf %177, %178 : vector<32x128xf32>
    %c10 = arith.constant 10 : index
    %c0_107 = arith.constant 0 : index
    %c0_108 = arith.constant 0 : index
    %180 = vector.load %arg1[%c10, %c0_107, %c0_108] : memref<12x256x128xf32, #tpu.memory_space<vmem>>, vector<1x256x128xf32>
    %181 = vector.shape_cast %180 : vector<1x256x128xf32> to vector<256x128xf32>
    %c10_109 = arith.constant 10 : index
    %c0_110 = arith.constant 0 : index
    %c0_111 = arith.constant 0 : index
    %182 = vector.load %arg2[%c10_109, %c0_110, %c0_111] : memref<12x1x128xf32, #tpu.memory_space<vmem>>, vector<1x1x128xf32>
    %183 = vector.shape_cast %182 : vector<1x1x128xf32> to vector<1x128xf32>
    %184 = vector.extract_strided_slice %181 {offsets = [128, 0], sizes = [128, 128], strides = [1, 1]} : vector<256x128xf32> to vector<128x128xf32>
    %cst_112 = arith.constant dense<0.000000e+00> : vector<32x128xf32>
    %185 = tpu.matmul %179, %184, %cst_112 {dimension_numbers = #tpu.dot_dimension_numbers<[1], [0], [0], [1], [0, 0, 1, 1], [], []>} : vector<32x128xf32>, vector<128x128xf32>, vector<32x128xf32> -> vector<32x128xf32>
    %186 = vector.broadcast %183 : vector<1x128xf32> to vector<32x128xf32>
    %187 = arith.addf %185, %186 : vector<32x128xf32>
    %cst_113 = arith.constant 0.000000e+00 : f32
    %188 = vector.broadcast %cst_113 : f32 to vector<32x128xf32>
    %189 = arith.maximumf %187, %188 : vector<32x128xf32>
    %c11 = arith.constant 11 : index
    %c0_114 = arith.constant 0 : index
    %c0_115 = arith.constant 0 : index
    %190 = vector.load %arg1[%c11, %c0_114, %c0_115] : memref<12x256x128xf32, #tpu.memory_space<vmem>>, vector<1x256x128xf32>
    %191 = vector.shape_cast %190 : vector<1x256x128xf32> to vector<256x128xf32>
    %c11_116 = arith.constant 11 : index
    %c0_117 = arith.constant 0 : index
    %c0_118 = arith.constant 0 : index
    %192 = vector.load %arg2[%c11_116, %c0_117, %c0_118] : memref<12x1x128xf32, #tpu.memory_space<vmem>>, vector<1x1x128xf32>
    %193 = vector.shape_cast %192 : vector<1x1x128xf32> to vector<1x128xf32>
    %194 = vector.extract_strided_slice %191 {offsets = [128, 0], sizes = [128, 128], strides = [1, 1]} : vector<256x128xf32> to vector<128x128xf32>
    %cst_119 = arith.constant dense<0.000000e+00> : vector<32x128xf32>
    %195 = tpu.matmul %189, %194, %cst_119 {dimension_numbers = #tpu.dot_dimension_numbers<[1], [0], [0], [1], [0, 0, 1, 1], [], []>} : vector<32x128xf32>, vector<128x128xf32>, vector<32x128xf32> -> vector<32x128xf32>
    %196 = vector.broadcast %193 : vector<1x128xf32> to vector<32x128xf32>
    %197 = arith.addf %195, %196 : vector<32x128xf32>
    %cst_120 = arith.constant 0.000000e+00 : f32
    %198 = vector.broadcast %cst_120 : f32 to vector<32x128xf32>
    %199 = arith.maximumf %197, %198 : vector<32x128xf32>
    %200 = arith.addf %199, %179 : vector<32x128xf32>
    %cst_121 = arith.constant 0.000000e+00 : f32
    %201 = vector.broadcast %cst_121 : f32 to vector<32x128xf32>
    %202 = arith.maximumf %200, %201 : vector<32x128xf32>
    %c1_122 = arith.constant 1 : index
    %c0_123 = arith.constant 0 : index
    %c0_124 = arith.constant 0 : index
    %203 = vector.load %arg3[%c1_122, %c0_123, %c0_124] : memref<3x128x128xf32, #tpu.memory_space<vmem>>, vector<1x128x128xf32>
    %204 = vector.shape_cast %203 : vector<1x128x128xf32> to vector<128x128xf32>
    %cst_125 = arith.constant dense<0.000000e+00> : vector<32x128xf32>
    %205 = tpu.matmul %202, %204, %cst_125 {dimension_numbers = #tpu.dot_dimension_numbers<[1], [0], [0], [1], [0, 0, 1, 1], [], []>} : vector<32x128xf32>, vector<128x128xf32>, vector<32x128xf32> -> vector<32x128xf32>
    %c1_126 = arith.constant 1 : index
    %c0_127 = arith.constant 0 : index
    %c0_128 = arith.constant 0 : index
    %206 = vector.load %arg4[%c1_126, %c0_127, %c0_128] : memref<3x1x128xf32, #tpu.memory_space<vmem>>, vector<1x1x128xf32>
    %207 = vector.shape_cast %206 : vector<1x1x128xf32> to vector<1x128xf32>
    %208 = vector.broadcast %207 : vector<1x128xf32> to vector<32x128xf32>
    %209 = arith.addf %205, %208 : vector<32x128xf32>
    %cst_129 = arith.constant 0.000000e+00 : f32
    %210 = vector.broadcast %cst_129 : f32 to vector<32x128xf32>
    %211 = arith.maximumf %209, %210 : vector<32x128xf32>
    %c2_130 = arith.constant 2 : index
    %c0_131 = arith.constant 0 : index
    %c0_132 = arith.constant 0 : index
    %212 = vector.load %arg3[%c2_130, %c0_131, %c0_132] : memref<3x128x128xf32, #tpu.memory_space<vmem>>, vector<1x128x128xf32>
    %213 = vector.shape_cast %212 : vector<1x128x128xf32> to vector<128x128xf32>
    %cst_133 = arith.constant dense<0.000000e+00> : vector<32x128xf32>
    %214 = tpu.matmul %211, %213, %cst_133 {dimension_numbers = #tpu.dot_dimension_numbers<[1], [0], [0], [1], [0, 0, 1, 1], [], []>} : vector<32x128xf32>, vector<128x128xf32>, vector<32x128xf32> -> vector<32x128xf32>
    %c2_134 = arith.constant 2 : index
    %c0_135 = arith.constant 0 : index
    %c0_136 = arith.constant 0 : index
    %215 = vector.load %arg4[%c2_134, %c0_135, %c0_136] : memref<3x1x128xf32, #tpu.memory_space<vmem>>, vector<1x1x128xf32>
    %216 = vector.shape_cast %215 : vector<1x1x128xf32> to vector<1x128xf32>
    %217 = vector.broadcast %216 : vector<1x128xf32> to vector<32x128xf32>
    %218 = arith.addf %214, %217 : vector<32x128xf32>
    %c0_137 = arith.constant 0 : index
    %c0_138 = arith.constant 0 : index
    %219 = vector.load %arg5[%c0_137, %c0_138] : memref<32x128xf32, #tpu.memory_space<vmem>>, vector<32x128xf32>
    tpu.vector_store %arg5[%c0_137, %c0_138], %218 {strides = array<i32>} : memref<32x128xf32, #tpu.memory_space<vmem>>, vector<32x128xf32>,
    return
  }
}

</mosaic_0001>

<llo_original>
// kernel: tcn_forward.1
$region0: #{tcn_forward.1}
  #allocation0 [shape = 'u32[]', space=smem, size = 0x4, offset = 0x4, fixed_abs, tag = 'smem constant byte address 0x4 - core index']
  #allocation1 [shape = 'u32[72,128]{1,0:T(1,128)}', space=vmem, size = 0x9000, scoped, tag = 'internal scratch']
  %s0 = inlined_call_operand.vmem [shape: f32[32,128], index: 0, kind: input, shape index: {}]
  %s1 = inlined_call_operand.hbm [shape: f32[12,256,128], index: 1, kind: input, shape index: {}]
  %s2 = inlined_call_operand.hbm [shape: f32[12,1,128], index: 2, kind: input, shape index: {}]
  %s3 = inlined_call_operand.hbm [shape: f32[3,128,128], index: 3, kind: input, shape index: {}]
  %s4 = inlined_call_operand.hbm [shape: f32[3,1,128], index: 4, kind: input, shape index: {}]
  %s5 = inlined_call_operand.vmem [shape: f32[32,128], index: 5, kind: output, shape index: {}]
  %s6 = sld [smem:[#allocation0]]
  $region46: #{tcn_forward.1} parent=0
    _
  %s8 = ssub.s32 1, %s6
  %s9 = scalar_select 0, %s8, %s6
  $region1: #{tcn_forward.1} parent=0
    #allocation2 [shape = 'u8[1572864]{0}', space=vmem, size = 0x180000, scoped, tag = 'input window, operand 1, single buffered']
    #allocation3 [shape = 's32[1]{0}', space=sflag, size = 0x4, scoped, tag = 'scoped memory for tcn_forward.1']
    #allocation4 [shape = 'u8[6144]{0}', space=vmem, size = 0x1800, scoped, tag = 'input window, operand 2, single buffered']
    #allocation5 [shape = 's32[1]{0}', space=sflag, size = 0x4, scoped, tag = 'scoped memory for tcn_forward.1']
    #allocation6 [shape = 'u8[196608]{0}', space=vmem, size = 0x30000, scoped, tag = 'input window, operand 3, single buffered']
    #allocation7 [shape = 'u8[1536]{0}', space=vmem, size = 0x800, scoped, tag = 'input window, operand 4, single buffered']
    #allocation8 [shape = 's32[1]{0}', space=sflag, size = 0x4, scoped, tag = 'scoped memory for tcn_forward.1']
    %10 = vsyncpa [#allocation3], 0
    %11 = vsyncpa [#allocation5], 0
    %12 = vsyncpa [#allocation8], 0
    // Predicated region
    $region2: #{tcn_forward.1} parent=1 // pred_check
      _
    $region3: #{tcn_forward.1} parent=1 // pred_check_branch
      %14 = sbr.rel (0) target = $region5
    $region4: #{tcn_forward.1} parent=1 // pred_region
      _
    $region5: #{tcn_forward.1} parent=1 // pred_fallthru
      _
    // Predicated region
    $region6: #{tcn_forward.1} parent=1 // pred_check
      _
    $region7: #{tcn_forward.1} parent=1 // pred_check_branch
      %16 = sbr.rel (0) target = $region9
    $region8: #{tcn_forward.1} parent=1 // pred_region
      %18 = vsyncadd [#allocation3], 0
      %s19 = sshll.u32 %s1, 4
      %s20 = int_to_ptr.hbm [resolvable:$true] %s19
      %s21 = sshll.u32 [#allocation2], 4
      %s22 = int_to_ptr.vmem [resolvable:$true] %s21
      %27 = dma.hbm_to_vmem [thread:$0]  %s20, 49152, %s22, [#allocation3], 128, 128, 8
    $region9: #{tcn_forward.1} parent=1 // pred_fallthru
      _
    // Predicated region
    $region10: #{tcn_forward.1} parent=1 // pred_check
      _
    $region11: #{tcn_forward.1} parent=1 // pred_check_branch
      %29 = sbr.rel (0) target = $region13
    $region12: #{tcn_forward.1} parent=1 // pred_region
      %31 = vsyncadd [#allocation5], 0
      %s32 = sshll.u32 %s2, 4
      %s33 = int_to_ptr.hbm [resolvable:$true] %s32
      %s34 = sshll.u32 [#allocation4], 4
      %s35 = int_to_ptr.vmem [resolvable:$true] %s34
      %40 = dma.hbm_to_vmem [thread:$0]  %s33, 192, %s35, [#allocation5], 16, 16, 1
    $region13: #{tcn_forward.1} parent=1 // pred_fallthru
      _
    // Predicated region
    $region14: #{tcn_forward.1} parent=1 // pred_check
      _
    $region15: #{tcn_forward.1} parent=1 // pred_check_branch
      %42 = sbr.rel (0) target = $region17
    $region16: #{tcn_forward.1} parent=1 // pred_region
      %44 = vsyncadd [#allocation5], 0
      %s45 = sshll.u32 %s3, 4
      %s46 = int_to_ptr.hbm [resolvable:$true] %s45
      %s47 = sshll.u32 [#allocation6], 4
      %s48 = int_to_ptr.vmem [resolvable:$true] %s47
      %53 = dma.hbm_to_vmem [thread:$0]  %s46, 6144, %s48, [#allocation5], 128, 128, 8
    $region17: #{tcn_forward.1} parent=1 // pred_fallthru
      _
    // Predicated region
    $region18: #{tcn_forward.1} parent=1 // pred_check
      _
    $region19: #{tcn_forward.1} parent=1 // pred_check_branch
      %55 = sbr.rel (0) target = $region21
    $region20: #{tcn_forward.1} parent=1 // pred_region
      %57 = vsyncadd [#allocation8], 0
      %s58 = sshll.u32 %s4, 4
      %s59 = int_to_ptr.hbm [resolvable:$true] %s58
      %s60 = sshll.u32 [#allocation7], 4
      %s61 = int_to_ptr.vmem [resolvable:$true] %s60
      %66 = dma.hbm_to_vmem [thread:$0]  %s59, 48, %s61, [#allocation8], 16, 16, 1
    $region21: #{tcn_forward.1} parent=1 // pred_fallthru
      _
    // Predicated region
    $region22: #{tcn_forward.1} parent=1 // pred_check
      _
    $region23: #{tcn_forward.1} parent=1 // pred_check_branch
      %68 = sbr.rel (0) target = $region25
    $region24: #{tcn_forward.1} parent=1 // pred_region
      %70 = dma.done [#allocation3], 49152
    $region25: #{tcn_forward.1} parent=1 // pred_fallthru
      _
    // Predicated region
    $region26: #{tcn_forward.1} parent=1 // pred_check
      _
    $region27: #{tcn_forward.1} parent=1 // pred_check_branch
      %72 = sbr.rel (0) target = $region29
    $region28: #{tcn_forward.1} parent=1 // pred_region
      %74 = dma.done [#allocation5], 192
    $region29: #{tcn_forward.1} parent=1 // pred_fallthru
      _
    // Predicated region
    $region30: #{tcn_forward.1} parent=1 // pred_check
      _
    $region31: #{tcn_forward.1} parent=1 // pred_check_branch
      %76 = sbr.rel (0) target = $region33
    $region32: #{tcn_forward.1} parent=1 // pred_region
      %78 = dma.done [#allocation5], 6144
    $region33: #{tcn_forward.1} parent=1 // pred_fallthru
      _
    // Predicated region
    $region34: #{tcn_forward.1} parent=1 // pred_check
      _
    $region35: #{tcn_forward.1} parent=1 // pred_check_branch
      %80 = sbr.rel (0) target = $region37
    $region36: #{tcn_forward.1} parent=1 // pred_region
      %82 = dma.done [#allocation8], 48
    $region37: #{tcn_forward.1} parent=1 // pred_fallthru
      _
    %v83 = vlaneseq
    %v84 = vshrl.u32 %v83, 7
    %v85 = vadd.s32 %v84, 8
    %v86 = vadd.s32 %v84, 16
    %v87 = vadd.s32 %v84, 24
    %vm88 = vcmp.lt.s32.totalorder %v84, 0
    %v89 = vsub.s32 0, %v84
    %v90 = vsel %vm88, %v89, %v84
    %v91 = vshrl.u32 %v90, 4
    %v92 = vand.u32 %v90, 15
    %v93 = vsub.s32 0, %v92
    %v94 = vsel %vm88, %v93, %v92
    %vm95 = vcmp.lt.s32.totalorder %v85, 0
    %v96 = vsub.s32 0, %v85
    %v97 = vsel %vm95, %v96, %v85
    %v98 = vshrl.u32 %v97, 4
    %v99 = vand.u32 %v97, 15
    %v100 = vsub.s32 0, %v99
    %v101 = vsel %vm95, %v100, %v99
    %vm102 = vcmp.lt.s32.totalorder %v86, 0
    %v103 = vsub.s32 0, %v86
    %v104 = vsel %vm102, %v103, %v86
    %v105 = vshrl.u32 %v104, 4
    %v106 = vand.u32 %v104, 15
    %v107 = vsub.s32 0, %v106
    %v108 = vsel %vm102, %v107, %v106
    %vm109 = vcmp.lt.s32.totalorder %v87, 0
    %v110 = vsub.s32 0, %v87
    %v111 = vsel %vm109, %v110, %v87
    %v112 = vshrl.u32 %v111, 4
    %v113 = vand.u32 %v111, 15
    %v114 = vsub.s32 0, %v113
    %v115 = vsel %vm109, %v114, %v113
    %vm116 = vcmp.ne.s32.totalorder %v94, 0
    %vm117 = vcmp.ne.s32.totalorder %v101, 0
    %vm118 = vcmp.ne.s32.totalorder %v108, 0
    %vm119 = vcmp.ne.s32.totalorder %v115, 0
    %vm120 = vcmp.lt.s32.totalorder %v94, 0
    %vm121 = vcmp.lt.s32.totalorder %v101, 0
    %vm122 = vcmp.lt.s32.totalorder %v108, 0
    %vm123 = vcmp.lt.s32.totalorder %v115, 0
    %vm124 = vmand %vm120, %vm116
    %vm125 = vmand %vm121, %vm117
    %vm126 = vmand %vm122, %vm118
    %vm127 = vmand %vm123, %vm119
    %v128 = vadd.s32 %v94, 16
    %v129 = vadd.s32 %v101, 16
    %v130 = vadd.s32 %v108, 16
    %v131 = vadd.s32 %v115, 16
    %v132 = vsel %vm124, %v128, %v94
    %v133 = vsel %vm125, %v129, %v101
    %v134 = vsel %vm126, %v130, %v108
    %v135 = vsel %vm127, %v131, %v115
    %v136 = vld [vmem:[%s0] sm:$0xff]
    %v137 = vld [vmem:[%s0 + $0x8] sm:$0xff]
    %v138 = vld [vmem:[%s0 + $0x10] sm:$0xff]
    %v139 = vld [vmem:[%s0 + $0x18] sm:$0xff]
    %v140 = vld [vmem:[#allocation6] sm:$0xff]
    %v141 = vld [vmem:[#allocation6 + $0x8] sm:$0xff]
    %v142 = vld [vmem:[#allocation6 + $0x10] sm:$0xff]
    %v143 = vld [vmem:[#allocation6 + $0x18] sm:$0xff]
    %v144 = vld [vmem:[#allocation6 + $0x20] sm:$0xff]
    %v145 = vld [vmem:[#allocation6 + $0x28] sm:$0xff]
    %v146 = vld [vmem:[#allocation6 + $0x30] sm:$0xff]
    %v147 = vld [vmem:[#allocation6 + $0x38] sm:$0xff]
    %v148 = vld [vmem:[#allocation6 + $0x40] sm:$0xff]
    %v149 = vld [vmem:[#allocation6 + $0x48] sm:$0xff]
    %v150 = vld [vmem:[#allocation6 + $0x50] sm:$0xff]
    %v151 = vld [vmem:[#allocation6 + $0x58] sm:$0xff]
    %v152 = vld [vmem:[#allocation6 + $0x60] sm:$0xff]
    %v153 = vld [vmem:[#allocation6 + $0x68] sm:$0xff]
    %v154 = vld [vmem:[#allocation6 + $0x70] sm:$0xff]
    %v155 = vld [vmem:[#allocation6 + $0x78] sm:$0xff]
    %v156 = vld [vmem:[#allocation7] sm:$0x1]
    %v158 = vperm.slane %v156, 0
    %160 = vmatpush.msra.mxu0 %v155
    %161 = vmatpush.msra.mxu0 %v154
    %162 = vmatpush.msra.mxu0 %v153
    %163 = vmatpush.msra.mxu0 %v152
    %164 = vmatpush.msra.mxu0 %v151
    %165 = vmatpush.msra.mxu0 %v150
    %166 = vmatpush.msra.mxu0 %v149
    %167 = vmatpush.msra.mxu0 %v148
    %168 = vmatpush.msra.mxu0 %v147
    %169 = vmatpush.msra.mxu0 %v146
    %170 = vmatpush.msra.mxu0 %v145
    %171 = vmatpush.msra.mxu0 %v144
    %172 = vmatpush.msra.mxu0 %v143
    %173 = vmatpush.msra.mxu0 %v142
    %174 = vmatpush.msra.mxu0 %v141
    %175 = vmatpush.msra.mxu0 %v140
    %176 = vmatmul.f32.gmra.mxu0 %v136
    %v177 = vpop.f32.mrf.mxu0
    %v178 = vadd.f32 %v158, %v177
    %179 = vmatmul.f32.gmra.mxu0 %v137
    %v180 = vpop.f32.mrf.mxu0
    %v181 = vadd.f32 %v158, %v180
    %182 = vmatmul.f32.gmra.mxu0 %v138
    %v183 = vpop.f32.mrf.mxu0
    %v184 = vadd.f32 %v158, %v183
    %185 = vmatmul.f32.gmra.mxu0 %v139
    %v186 = vpop.f32.mrf.mxu0
    %v187 = vadd.f32 %v158, %v186
    %188 = vdwg.mxu0
    %v189 = vld [vmem:[#allocation2] sm:$0xff]
    %v190 = vld [vmem:[#allocation2 + $0x8] sm:$0xff]
    %v191 = vld [vmem:[#allocation2 + $0x10] sm:$0xff]
    %v192 = vld [vmem:[#allocation2 + $0x18] sm:$0xff]
    %v193 = vld [vmem:[#allocation2 + $0x20] sm:$0xff]
    %v194 = vld [vmem:[#allocation2 + $0x28] sm:$0xff]
    %v195 = vld [vmem:[#allocation2 + $0x30] sm:$0xff]
    %v196 = vld [vmem:[#allocation2 + $0x38] sm:$0xff]
    %v197 = vld [vmem:[#allocation2 + $0x40] sm:$0xff]
    %v198 = vld [vmem:[#allocation2 + $0x48] sm:$0xff]
    %v199 = vld [vmem:[#allocation2 + $0x50] sm:$0xff]
    %v200 = vld [vmem:[#allocation2 + $0x58] sm:$0xff]
    %v201 = vld [vmem:[#allocation2 + $0x60] sm:$0xff]
    %v202 = vld [vmem:[#allocation2 + $0x68] sm:$0xff]
    %v203 = vld [vmem:[#allocation2 + $0x70] sm:$0xff]
    %v204 = vld [vmem:[#allocation2 + $0x78] sm:$0xff]
    %v205 = vld [vmem:[#allocation2 + $0x80] sm:$0xff]
    %v206 = vld [vmem:[#allocation2 + $0x88] sm:$0xff]
    %v207 = vld [vmem:[#allocation2 + $0x90] sm:$0xff]
    %v208 = vld [vmem:[#allocation2 + $0x98] sm:$0xff]
    %v209 = vld [vmem:[#allocation2 + $0xa0] sm:$0xff]
    %v210 = vld [vmem:[#allocation2 + $0xa8] sm:$0xff]
    %v211 = vld [vmem:[#allocation2 + $0xb0] sm:$0xff]
    %v212 = vld [vmem:[#allocation2 + $0xb8] sm:$0xff]
    %v213 = vld [vmem:[#allocation2 + $0xc0] sm:$0xff]
    %v214 = vld [vmem:[#allocation2 + $0xc8] sm:$0xff]
    %v215 = vld [vmem:[#allocation2 + $0xd0] sm:$0xff]
    %v216 = vld [vmem:[#allocation2 + $0xd8] sm:$0xff]
    %v217 = vld [vmem:[#allocation2 + $0xe0] sm:$0xff]
    %v218 = vld [vmem:[#allocation2 + $0xe8] sm:$0xff]
    %v219 = vld [vmem:[#allocation2 + $0xf0] sm:$0xff]
    %v220 = vld [vmem:[#allocation2 + $0xf8] sm:$0xff]
    %v221 = vld [vmem:[#allocation4] sm:$0x1]
    %v222 = vrot.slane %v136, 7
    %v223 = vrot.slane %v137, 7
    %v224 = vrot.slane %v138, 7
    %v225 = vrot.slane %v139, 7
    %vm226 = vcmp.lt.s32.totalorder %v84, 1
    %v227 = vsel %vm226, %v224, %v225
    %v228 = vsel %vm226, %v223, %v224
    %v229 = vsel %vm226, %v222, %v223
    %v230 = vsel %vm226, %v225, %v222
    %vm231 = vcmp.lt.s32.totalorder %v132, 1
    %vm232 = vcmp.lt.s32.totalorder %v133, 1
    %vm233 = vcmp.lt.s32.totalorder %v134, 1
    %vm234 = vcmp.lt.s32.totalorder %v135, 1
    %v235 = vsel %vm231, 0.0, %v230
    %v236 = vsel %vm232, 0.0, %v229
    %v237 = vsel %vm233, 0.0, %v228
    %v238 = vsel %vm234, 0.0, %v227
    %v240 = vperm.slane %v221, 0
    %242 = vmatpush.msra.mxu0 %v204
    %243 = vmatpush.msra.mxu0 %v203
    %244 = vmatpush.msra.mxu0 %v202
    %245 = vmatpush.msra.mxu0 %v201
    %246 = vmatpush.msra.mxu0 %v200
    %247 = vmatpush.msra.mxu0 %v199
    %248 = vmatpush.msra.mxu0 %v198
    %249 = vmatpush.msra.mxu0 %v197
    %250 = vmatpush.msra.mxu0 %v196
    %251 = vmatpush.msra.mxu0 %v195
    %252 = vmatpush.msra.mxu0 %v194
    %253 = vmatpush.msra.mxu0 %v193
    %254 = vmatpush.msra.mxu0 %v192
    %255 = vmatpush.msra.mxu0 %v191
    %256 = vmatpush.msra.mxu0 %v190
    %257 = vmatpush.msra.mxu0 %v189
    %258 = vmatmul.f32.gmra.mxu0 %v235
    %v259 = vpop.f32.mrf.mxu0
    %v260 = vadd.f32 %v240, %v259
    %261 = vmatmul.f32.gmra.mxu0 %v236
    %v262 = vpop.f32.mrf.mxu0
    %v263 = vadd.f32 %v240, %v262
    %264 = vmatmul.f32.gmra.mxu0 %v237
    %v265 = vpop.f32.mrf.mxu0
    %v266 = vadd.f32 %v240, %v265
    %267 = vmatmul.f32.gmra.mxu0 %v238
    %v268 = vpop.f32.mrf.mxu0
    %v269 = vadd.f32 %v240, %v268
    %270 = vdwg.mxu0
    %271 = vmatpush.msra.mxu0 %v220
    %272 = vmatpush.msra.mxu0 %v219
    %273 = vmatpush.msra.mxu0 %v218
    %274 = vmatpush.msra.mxu0 %v217
    %275 = vmatpush.msra.mxu0 %v216
    %276 = vmatpush.msra.mxu0 %v215
    %277 = vmatpush.msra.mxu0 %v214
    %278 = vmatpush.msra.mxu0 %v213
    %279 = vmatpush.msra.mxu0 %v212
    %280 = vmatpush.msra.mxu0 %v211
    %281 = vmatpush.msra.mxu0 %v210
    %282 = vmatpush.msra.mxu0 %v209
    %283 = vmatpush.msra.mxu0 %v208
    %284 = vmatpush.msra.mxu0 %v207
    %285 = vmatpush.msra.mxu0 %v206
    %286 = vmatpush.msra.mxu0 %v205
    %287 = vmatmul.f32.gmra.mxu0 %v136
    %v288 = vpop.f32.mrf.mxu0
    %v289 = vadd.f32 %v260, %v288
    %290 = vmatmul.f32.gmra.mxu0 %v137
    %v291 = vpop.f32.mrf.mxu0
    %v292 = vadd.f32 %v263, %v291
    %293 = vmatmul.f32.gmra.mxu0 %v138
    %v294 = vpop.f32.mrf.mxu0
    %v295 = vadd.f32 %v266, %v294
    %296 = vmatmul.f32.gmra.mxu0 %v139
    %v297 = vpop.f32.mrf.mxu0
    %v298 = vadd.f32 %v269, %v297
    %299 = vdwg.mxu0
    %v300 = vmax.f32 %v289, 0.0
    %v301 = vmax.f32 %v292, 0.0
    %v302 = vmax.f32 %v295, 0.0
    %v303 = vmax.f32 %v298, 0.0
    %s304 = scalar_lea.vmem [#allocation2], 256
    %v305 = vld [vmem:[%s304] sm:$0xff]
    %v306 = vld [vmem:[%s304 + $0x8] sm:$0xff]
    %v307 = vld [vmem:[%s304 + $0x10] sm:$0xff]
    %v308 = vld [vmem:[%s304 + $0x18] sm:$0xff]
    %v309 = vld [vmem:[%s304 + $0x20] sm:$0xff]
    %v310 = vld [vmem:[%s304 + $0x28] sm:$0xff]
    %v311 = vld [vmem:[%s304 + $0x30] sm:$0xff]
    %v312 = vld [vmem:[%s304 + $0x38] sm:$0xff]
    %v313 = vld [vmem:[%s304 + $0x40] sm:$0xff]
    %v314 = vld [vmem:[%s304 + $0x48] sm:$0xff]
    %v315 = vld [vmem:[%s304 + $0x50] sm:$0xff]
    %v316 = vld [vmem:[%s304 + $0x58] sm:$0xff]
    %v317 = vld [vmem:[%s304 + $0x60] sm:$0xff]
    %v318 = vld [vmem:[%s304 + $0x68] sm:$0xff]
    %v319 = vld [vmem:[%s304 + $0x70] sm:$0xff]
    %v320 = vld [vmem:[%s304 + $0x78] sm:$0xff]
    %v321 = vld [vmem:[%s304 + $0x80] sm:$0xff]
    %v322 = vld [vmem:[%s304 + $0x88] sm:$0xff]
    %v323 = vld [vmem:[%s304 + $0x90] sm:$0xff]
    %v324 = vld [vmem:[%s304 + $0x98] sm:$0xff]
    %v325 = vld [vmem:[%s304 + $0xa0] sm:$0xff]
    %v326 = vld [vmem:[%s304 + $0xa8] sm:$0xff]
    %v327 = vld [vmem:[%s304 + $0xb0] sm:$0xff]
    %v328 = vld [vmem:[%s304 + $0xb8] sm:$0xff]
    %v329 = vld [vmem:[%s304 + $0xc0] sm:$0xff]
    %v330 = vld [vmem:[%s304 + $0xc8] sm:$0xff]
    %v331 = vld [vmem:[%s304 + $0xd0] sm:$0xff]
    %v332 = vld [vmem:[%s304 + $0xd8] sm:$0xff]
    %v333 = vld [vmem:[%s304 + $0xe0] sm:$0xff]
    %v334 = vld [vmem:[%s304 + $0xe8] sm:$0xff]
    %v335 = vld [vmem:[%s304 + $0xf0] sm:$0xff]
    %v336 = vld [vmem:[%s304 + $0xf8] sm:$0xff]
    %s337 = scalar_lea.vmem [#allocation4], 1
    %v338 = vld [vmem:[%s337] sm:$0x1]
    %v339 = vrot.slane %v300, 7
    %v340 = vrot.slane %v301, 7
    %v341 = vrot.slane %v302, 7
    %v342 = vrot.slane %v303, 7
    %v343 = vsel %vm226, %v341, %v342
    %v344 = vsel %vm226, %v340, %v341
    %v345 = vsel %vm226, %v339, %v340
    %v346 = vsel %vm226, %v342, %v339
    %v347 = vsel %vm231, 0.0, %v346
    %v348 = vsel %vm232, 0.0, %v345
    %v349 = vsel %vm233, 0.0, %v344
    %v350 = vsel %vm234, 0.0, %v343
    %v352 = vperm.slane %v338, 0
    %354 = vmatpush.msra.mxu0 %v320
    %355 = vmatpush.msra.mxu0 %v319
    %356 = vmatpush.msra.mxu0 %v318
    %357 = vmatpush.msra.mxu0 %v317
    %358 = vmatpush.msra.mxu0 %v316
    %359 = vmatpush.msra.mxu0 %v315
    %360 = vmatpush.msra.mxu0 %v314
    %361 = vmatpush.msra.mxu0 %v313
    %362 = vmatpush.msra.mxu0 %v312
    %363 = vmatpush.msra.mxu0 %v311
    %364 = vmatpush.msra.mxu0 %v310
    %365 = vmatpush.msra.mxu0 %v309
    %366 = vmatpush.msra.mxu0 %v308
    %367 = vmatpush.msra.mxu0 %v307
    %368 = vmatpush.msra.mxu0 %v306
    %369 = vmatpush.msra.mxu0 %v305
    %370 = vmatmul.f32.gmra.mxu0 %v347
    %v371 = vpop.f32.mrf.mxu0
    %v372 = vadd.f32 %v352, %v371
    %373 = vmatmul.f32.gmra.mxu0 %v348
    %v374 = vpop.f32.mrf.mxu0
    %v375 = vadd.f32 %v352, %v374
    %376 = vmatmul.f32.gmra.mxu0 %v349
    %v377 = vpop.f32.mrf.mxu0
    %v378 = vadd.f32 %v352, %v377
    %379 = vmatmul.f32.gmra.mxu0 %v350
    %v380 = vpop.f32.mrf.mxu0
    %v381 = vadd.f32 %v352, %v380
    %382 = vdwg.mxu0
    %383 = vmatpush.msra.mxu0 %v336
    %384 = vmatpush.msra.mxu0 %v335
    %385 = vmatpush.msra.mxu0 %v334
    %386 = vmatpush.msra.mxu0 %v333
    %387 = vmatpush.msra.mxu0 %v332
    %388 = vmatpush.msra.mxu0 %v331
    %389 = vmatpush.msra.mxu0 %v330
    %390 = vmatpush.msra.mxu0 %v329
    %391 = vmatpush.msra.mxu0 %v328
    %392 = vmatpush.msra.mxu0 %v327
    %393 = vmatpush.msra.mxu0 %v326
    %394 = vmatpush.msra.mxu0 %v325
    %395 = vmatpush.msra.mxu0 %v324
    %396 = vmatpush.msra.mxu0 %v323
    %397 = vmatpush.msra.mxu0 %v322
    %398 = vmatpush.msra.mxu0 %v321
    %399 = vmatmul.f32.gmra.mxu0 %v300
    %v400 = vpop.f32.mrf.mxu0
    %v401 = vadd.f32 %v372, %v400
    %402 = vmatmul.f32.gmra.mxu0 %v301
    %v403 = vpop.f32.mrf.mxu0
    %v404 = vadd.f32 %v375, %v403
    %405 = vmatmul.f32.gmra.mxu0 %v302
    %v406 = vpop.f32.mrf.mxu0
    %v407 = vadd.f32 %v378, %v406
    %408 = vmatmul.f32.gmra.mxu0 %v303
    %v409 = vpop.f32.mrf.mxu0
    %v410 = vadd.f32 %v381, %v409
    %411 = vdwg.mxu0
    %v412 = vmax.f32 %v401, 0.0
    %v413 = vmax.f32 %v404, 0.0
    %v414 = vmax.f32 %v407, 0.0
    %v415 = vmax.f32 %v410, 0.0
    %v416 = vadd.f32 %v412, %v178
    %v417 = vadd.f32 %v413, %v181
    %v418 = vadd.f32 %v414, %v184
    %v419 = vadd.f32 %v415, %v187
    %v420 = vmax.f32 %v416, 0.0
    %v421 = vmax.f32 %v417, 0.0
    %v422 = vmax.f32 %v418, 0.0
    %v423 = vmax.f32 %v419, 0.0
    %s424 = scalar_lea.vmem [#allocation2], 512
    %v425 = vld [vmem:[%s424] sm:$0xff]
    %v426 = vld [vmem:[%s424 + $0x8] sm:$0xff]
    %v427 = vld [vmem:[%s424 + $0x10] sm:$0xff]
    %v428 = vld [vmem:[%s424 + $0x18] sm:$0xff]
    %v429 = vld [vmem:[%s424 + $0x20] sm:$0xff]
    %v430 = vld [vmem:[%s424 + $0x28] sm:$0xff]
    %v431 = vld [vmem:[%s424 + $0x30] sm:$0xff]
    %v432 = vld [vmem:[%s424 + $0x38] sm:$0xff]
    %v433 = vld [vmem:[%s424 + $0x40] sm:$0xff]
    %v434 = vld [vmem:[%s424 + $0x48] sm:$0xff]
    %v435 = vld [vmem:[%s424 + $0x50] sm:$0xff]
    %v436 = vld [vmem:[%s424 + $0x58] sm:$0xff]
    %v437 = vld [vmem:[%s424 + $0x60] sm:$0xff]
    %v438 = vld [vmem:[%s424 + $0x68] sm:$0xff]
    %v439 = vld [vmem:[%s424 + $0x70] sm:$0xff]
    %v440 = vld [vmem:[%s424 + $0x78] sm:$0xff]
    %v441 = vld [vmem:[%s424 + $0x80] sm:$0xff]
    %v442 = vld [vmem:[%s424 + $0x88] sm:$0xff]
    %v443 = vld [vmem:[%s424 + $0x90] sm:$0xff]
    %v444 = vld [vmem:[%s424 + $0x98] sm:$0xff]
    %v445 = vld [vmem:[%s424 + $0xa0] sm:$0xff]
    %v446 = vld [vmem:[%s424 + $0xa8] sm:$0xff]
    %v447 = vld [vmem:[%s424 + $0xb0] sm:$0xff]
    %v448 = vld [vmem:[%s424 + $0xb8] sm:$0xff]
    %v449 = vld [vmem:[%s424 + $0xc0] sm:$0xff]
    %v450 = vld [vmem:[%s424 + $0xc8] sm:$0xff]
    %v451 = vld [vmem:[%s424 + $0xd0] sm:$0xff]
    %v452 = vld [vmem:[%s424 + $0xd8] sm:$0xff]
    %v453 = vld [vmem:[%s424 + $0xe0] sm:$0xff]
    %v454 = vld [vmem:[%s424 + $0xe8] sm:$0xff]
    %v455 = vld [vmem:[%s424 + $0xf0] sm:$0xff]
    %v456 = vld [vmem:[%s424 + $0xf8] sm:$0xff]
    %s457 = scalar_lea.vmem [#allocation4], 2
    %v458 = vld [vmem:[%s457] sm:$0x1]
    %v459 = vrot.slane %v420, 6
    %v460 = vrot.slane %v421, 6
    %v461 = vrot.slane %v422, 6
    %v462 = vrot.slane %v423, 6
    %vm463 = vcmp.lt.s32.totalorder %v84, 2
    %v464 = vsel %vm463, %v461, %v462
    %v465 = vsel %vm463, %v460, %v461
    %v466 = vsel %vm463, %v459, %v460
    %v467 = vsel %vm463, %v462, %v459
    %vm468 = vcmp.lt.s32.totalorder %v132, 2
    %vm469 = vcmp.lt.s32.totalorder %v133, 2
    %vm470 = vcmp.lt.s32.totalorder %v134, 2
    %vm471 = vcmp.lt.s32.totalorder %v135, 2
    %v472 = vsel %vm468, 0.0, %v467
    %v473 = vsel %vm469, 0.0, %v466
    %v474 = vsel %vm470, 0.0, %v465
    %v475 = vsel %vm471, 0.0, %v464
    %v477 = vperm.slane %v458, 0
    %479 = vmatpush.msra.mxu0 %v440
    %480 = vmatpush.msra.mxu0 %v439
    %481 = vmatpush.msra.mxu0 %v438
    %482 = vmatpush.msra.mxu0 %v437
    %483 = vmatpush.msra.mxu0 %v436
    %484 = vmatpush.msra.mxu0 %v435
    %485 = vmatpush.msra.mxu0 %v434
    %486 = vmatpush.msra.mxu0 %v433
    %487 = vmatpush.msra.mxu0 %v432
    %488 = vmatpush.msra.mxu0 %v431
    %489 = vmatpush.msra.mxu0 %v430
    %490 = vmatpush.msra.mxu0 %v429
    %491 = vmatpush.msra.mxu0 %v428
    %492 = vmatpush.msra.mxu0 %v427
    %493 = vmatpush.msra.mxu0 %v426
    %494 = vmatpush.msra.mxu0 %v425
    %495 = vmatmul.f32.gmra.mxu0 %v472
    %v496 = vpop.f32.mrf.mxu0
    %v497 = vadd.f32 %v477, %v496
    %498 = vmatmul.f32.gmra.mxu0 %v473
    %v499 = vpop.f32.mrf.mxu0
    %v500 = vadd.f32 %v477, %v499
    %501 = vmatmul.f32.gmra.mxu0 %v474
    %v502 = vpop.f32.mrf.mxu0
    %v503 = vadd.f32 %v477, %v502
    %504 = vmatmul.f32.gmra.mxu0 %v475
    %v505 = vpop.f32.mrf.mxu0
    %v506 = vadd.f32 %v477, %v505
    %507 = vdwg.mxu0
    %508 = vmatpush.msra.mxu0 %v456
    %509 = vmatpush.msra.mxu0 %v455
    %510 = vmatpush.msra.mxu0 %v454
    %511 = vmatpush.msra.mxu0 %v453
    %512 = vmatpush.msra.mxu0 %v452
    %513 = vmatpush.msra.mxu0 %v451
    %514 = vmatpush.msra.mxu0 %v450
    %515 = vmatpush.msra.mxu0 %v449
    %516 = vmatpush.msra.mxu0 %v448
    %517 = vmatpush.msra.mxu0 %v447
    %518 = vmatpush.msra.mxu0 %v446
    %519 = vmatpush.msra.mxu0 %v445
    %520 = vmatpush.msra.mxu0 %v444
    %521 = vmatpush.msra.mxu0 %v443
    %522 = vmatpush.msra.mxu0 %v442
    %523 = vmatpush.msra.mxu0 %v441
    %524 = vmatmul.f32.gmra.mxu0 %v420
    %v525 = vpop.f32.mrf.mxu0
    %v526 = vadd.f32 %v497, %v525
    %527 = vmatmul.f32.gmra.mxu0 %v421
    %v528 = vpop.f32.mrf.mxu0
    %v529 = vadd.f32 %v500, %v528
    %530 = vmatmul.f32.gmra.mxu0 %v422
    %v531 = vpop.f32.mrf.mxu0
    %v532 = vadd.f32 %v503, %v531
    %533 = vmatmul.f32.gmra.mxu0 %v423
    %v534 = vpop.f32.mrf.mxu0
    %v535 = vadd.f32 %v506, %v534
    %536 = vdwg.mxu0
    %v537 = vmax.f32 %v526, 0.0
    %v538 = vmax.f32 %v529, 0.0
    %v539 = vmax.f32 %v532, 0.0
    %v540 = vmax.f32 %v535, 0.0
    %s541 = scalar_lea.vmem [#allocation2], 768
    %v542 = vld [vmem:[%s541] sm:$0xff]
    %v543 = vld [vmem:[%s541 + $0x8] sm:$0xff]
    %v544 = vld [vmem:[%s541 + $0x10] sm:$0xff]
    %v545 = vld [vmem:[%s541 + $0x18] sm:$0xff]
    %v546 = vld [vmem:[%s541 + $0x20] sm:$0xff]
    %v547 = vld [vmem:[%s541 + $0x28] sm:$0xff]
    %v548 = vld [vmem:[%s541 + $0x30] sm:$0xff]
    %v549 = vld [vmem:[%s541 + $0x38] sm:$0xff]
    %v550 = vld [vmem:[%s541 + $0x40] sm:$0xff]
    %v551 = vld [vmem:[%s541 + $0x48] sm:$0xff]
    %v552 = vld [vmem:[%s541 + $0x50] sm:$0xff]
    %v553 = vld [vmem:[%s541 + $0x58] sm:$0xff]
    %v554 = vld [vmem:[%s541 + $0x60] sm:$0xff]
    %v555 = vld [vmem:[%s541 + $0x68] sm:$0xff]
    %v556 = vld [vmem:[%s541 + $0x70] sm:$0xff]
    %v557 = vld [vmem:[%s541 + $0x78] sm:$0xff]
    %v558 = vld [vmem:[%s541 + $0x80] sm:$0xff]
    %v559 = vld [vmem:[%s541 + $0x88] sm:$0xff]
    %v560 = vld [vmem:[%s541 + $0x90] sm:$0xff]
    %v561 = vld [vmem:[%s541 + $0x98] sm:$0xff]
    %v562 = vld [vmem:[%s541 + $0xa0] sm:$0xff]
    %v563 = vld [vmem:[%s541 + $0xa8] sm:$0xff]
    %v564 = vld [vmem:[%s541 + $0xb0] sm:$0xff]
    %v565 = vld [vmem:[%s541 + $0xb8] sm:$0xff]
    %v566 = vld [vmem:[%s541 + $0xc0] sm:$0xff]
    %v567 = vld [vmem:[%s541 + $0xc8] sm:$0xff]
    %v568 = vld [vmem:[%s541 + $0xd0] sm:$0xff]
    %v569 = vld [vmem:[%s541 + $0xd8] sm:$0xff]
    %v570 = vld [vmem:[%s541 + $0xe0] sm:$0xff]
    %v571 = vld [vmem:[%s541 + $0xe8] sm:$0xff]
    %v572 = vld [vmem:[%s541 + $0xf0] sm:$0xff]
    %v573 = vld [vmem:[%s541 + $0xf8] sm:$0xff]
    %s574 = scalar_lea.vmem [#allocation4], 3
    %v575 = vld [vmem:[%s574] sm:$0x1]
    %v576 = vrot.slane %v537, 6
    %v577 = vrot.slane %v538, 6
    %v578 = vrot.slane %v539, 6
    %v579 = vrot.slane %v540, 6
    %v580 = vsel %vm463, %v578, %v579
    %v581 = vsel %vm463, %v577, %v578
    %v582 = vsel %vm463, %v576, %v577
    %v583 = vsel %vm463, %v579, %v576
    %v584 = vsel %vm468, 0.0, %v583
    %v585 = vsel %vm469, 0.0, %v582
    %v586 = vsel %vm470, 0.0, %v581
    %v587 = vsel %vm471, 0.0, %v580
    %v589 = vperm.slane %v575, 0
    %591 = vmatpush.msra.mxu0 %v557
    %592 = vmatpush.msra.mxu0 %v556
    %593 = vmatpush.msra.mxu0 %v555
    %594 = vmatpush.msra.mxu0 %v554
    %595 = vmatpush.msra.mxu0 %v553
    %596 = vmatpush.msra.mxu0 %v552
    %597 = vmatpush.msra.mxu0 %v551
    %598 = vmatpush.msra.mxu0 %v550
    %599 = vmatpush.msra.mxu0 %v549
    %600 = vmatpush.msra.mxu0 %v548
    %601 = vmatpush.msra.mxu0 %v547
    %602 = vmatpush.msra.mxu0 %v546
    %603 = vmatpush.msra.mxu0 %v545
    %604 = vmatpush.msra.mxu0 %v544
    %605 = vmatpush.msra.mxu0 %v543
    %606 = vmatpush.msra.mxu0 %v542
    %607 = vmatmul.f32.gmra.mxu0 %v584
    %v608 = vpop.f32.mrf.mxu0
    %v609 = vadd.f32 %v589, %v608
    %610 = vmatmul.f32.gmra.mxu0 %v585
    %v611 = vpop.f32.mrf.mxu0
    %v612 = vadd.f32 %v589, %v611
    %613 = vmatmul.f32.gmra.mxu0 %v586
    %v614 = vpop.f32.mrf.mxu0
    %v615 = vadd.f32 %v589, %v614
    %616 = vmatmul.f32.gmra.mxu0 %v587
    %v617 = vpop.f32.mrf.mxu0
    %v618 = vadd.f32 %v589, %v617
    %619 = vdwg.mxu0
    %620 = vmatpush.msra.mxu0 %v573
    %621 = vmatpush.msra.mxu0 %v572
    %622 = vmatpush.msra.mxu0 %v571
    %623 = vmatpush.msra.mxu0 %v570
    %624 = vmatpush.msra.mxu0 %v569
    %625 = vmatpush.msra.mxu0 %v568
    %626 = vmatpush.msra.mxu0 %v567
    %627 = vmatpush.msra.mxu0 %v566
    %628 = vmatpush.msra.mxu0 %v565
    %629 = vmatpush.msra.mxu0 %v564
    %630 = vmatpush.msra.mxu0 %v563
    %631 = vmatpush.msra.mxu0 %v562
    %632 = vmatpush.msra.mxu0 %v561
    %633 = vmatpush.msra.mxu0 %v560
    %634 = vmatpush.msra.mxu0 %v559
    %635 = vmatpush.msra.mxu0 %v558
    %636 = vmatmul.f32.gmra.mxu0 %v537
    %v637 = vpop.f32.mrf.mxu0
    %v638 = vadd.f32 %v609, %v637
    %639 = vmatmul.f32.gmra.mxu0 %v538
    %v640 = vpop.f32.mrf.mxu0
    %v641 = vadd.f32 %v612, %v640
    %642 = vmatmul.f32.gmra.mxu0 %v539
    %v643 = vpop.f32.mrf.mxu0
    %v644 = vadd.f32 %v615, %v643
    %645 = vmatmul.f32.gmra.mxu0 %v540
    %v646 = vpop.f32.mrf.mxu0
    %v647 = vadd.f32 %v618, %v646
    %648 = vdwg.mxu0
    %v649 = vmax.f32 %v638, 0.0
    %v650 = vmax.f32 %v641, 0.0
    %v651 = vmax.f32 %v644, 0.0
    %v652 = vmax.f32 %v647, 0.0
    %v653 = vadd.f32 %v649, %v420
    %v654 = vadd.f32 %v650, %v421
    %v655 = vadd.f32 %v651, %v422
    %v656 = vadd.f32 %v652, %v423
    %v657 = vmax.f32 %v653, 0.0
    %v658 = vmax.f32 %v654, 0.0
    %v659 = vmax.f32 %v655, 0.0
    %v660 = vmax.f32 %v656, 0.0
    %s661 = scalar_lea.vmem [#allocation2], 1024
    %v662 = vld [vmem:[%s661] sm:$0xff]
    %v663 = vld [vmem:[%s661 + $0x8] sm:$0xff]
    %v664 = vld [vmem:[%s661 + $0x10] sm:$0xff]
    %v665 = vld [vmem:[%s661 + $0x18] sm:$0xff]
    %v666 = vld [vmem:[%s661 + $0x20] sm:$0xff]
    %v667 = vld [vmem:[%s661 + $0x28] sm:$0xff]
    %v668 = vld [vmem:[%s661 + $0x30] sm:$0xff]
    %v669 = vld [vmem:[%s661 + $0x38] sm:$0xff]
    %v670 = vld [vmem:[%s661 + $0x40] sm:$0xff]
    %v671 = vld [vmem:[%s661 + $0x48] sm:$0xff]
    %v672 = vld [vmem:[%s661 + $0x50] sm:$0xff]
    %v673 = vld [vmem:[%s661 + $0x58] sm:$0xff]
    %v674 = vld [vmem:[%s661 + $0x60] sm:$0xff]
    %v675 = vld [vmem:[%s661 + $0x68] sm:$0xff]
    %v676 = vld [vmem:[%s661 + $0x70] sm:$0xff]
    %v677 = vld [vmem:[%s661 + $0x78] sm:$0xff]
    %v678 = vld [vmem:[%s661 + $0x80] sm:$0xff]
    %v679 = vld [vmem:[%s661 + $0x88] sm:$0xff]
    %v680 = vld [vmem:[%s661 + $0x90] sm:$0xff]
    %v681 = vld [vmem:[%s661 + $0x98] sm:$0xff]
    %v682 = vld [vmem:[%s661 + $0xa0] sm:$0xff]
    %v683 = vld [vmem:[%s661 + $0xa8] sm:$0xff]
    %v684 = vld [vmem:[%s661 + $0xb0] sm:$0xff]
    %v685 = vld [vmem:[%s661 + $0xb8] sm:$0xff]
    %v686 = vld [vmem:[%s661 + $0xc0] sm:$0xff]
    %v687 = vld [vmem:[%s661 + $0xc8] sm:$0xff]
    %v688 = vld [vmem:[%s661 + $0xd0] sm:$0xff]
    %v689 = vld [vmem:[%s661 + $0xd8] sm:$0xff]
    %v690 = vld [vmem:[%s661 + $0xe0] sm:$0xff]
    %v691 = vld [vmem:[%s661 + $0xe8] sm:$0xff]
    %v692 = vld [vmem:[%s661 + $0xf0] sm:$0xff]
    %v693 = vld [vmem:[%s661 + $0xf8] sm:$0xff]
    %s694 = scalar_lea.vmem [#allocation4], 4
    %v695 = vld [vmem:[%s694] sm:$0x1]
    %v696 = vrot.slane %v657, 4
    %v697 = vrot.slane %v658, 4
    %v698 = vrot.slane %v659, 4
    %v699 = vrot.slane %v660, 4
    %vm700 = vcmp.lt.s32.totalorder %v84, 4
    %v701 = vsel %vm700, %v698, %v699
    %v702 = vsel %vm700, %v697, %v698
    %v703 = vsel %vm700, %v696, %v697
    %v704 = vsel %vm700, %v699, %v696
    %vm705 = vcmp.lt.s32.totalorder %v132, 4
    %vm706 = vcmp.lt.s32.totalorder %v133, 4
    %vm707 = vcmp.lt.s32.totalorder %v134, 4
    %vm708 = vcmp.lt.s32.totalorder %v135, 4
    %v709 = vsel %vm705, 0.0, %v704
    %v710 = vsel %vm706, 0.0, %v703
    %v711 = vsel %vm707, 0.0, %v702
    %v712 = vsel %vm708, 0.0, %v701
    %v714 = vperm.slane %v695, 0
    %716 = vmatpush.msra.mxu0 %v677
    %717 = vmatpush.msra.mxu0 %v676
    %718 = vmatpush.msra.mxu0 %v675
    %719 = vmatpush.msra.mxu0 %v674
    %720 = vmatpush.msra.mxu0 %v673
    %721 = vmatpush.msra.mxu0 %v672
    %722 = vmatpush.msra.mxu0 %v671
    %723 = vmatpush.msra.mxu0 %v670
    %724 = vmatpush.msra.mxu0 %v669
    %725 = vmatpush.msra.mxu0 %v668
    %726 = vmatpush.msra.mxu0 %v667
    %727 = vmatpush.msra.mxu0 %v666
    %728 = vmatpush.msra.mxu0 %v665
    %729 = vmatpush.msra.mxu0 %v664
    %730 = vmatpush.msra.mxu0 %v663
    %731 = vmatpush.msra.mxu0 %v662
    %732 = vmatmul.f32.gmra.mxu0 %v709
    %v733 = vpop.f32.mrf.mxu0
    %v734 = vadd.f32 %v714, %v733
    %735 = vmatmul.f32.gmra.mxu0 %v710
    %v736 = vpop.f32.mrf.mxu0
    %v737 = vadd.f32 %v714, %v736
    %738 = vmatmul.f32.gmra.mxu0 %v711
    %v739 = vpop.f32.mrf.mxu0
    %v740 = vadd.f32 %v714, %v739
    %741 = vmatmul.f32.gmra.mxu0 %v712
    %v742 = vpop.f32.mrf.mxu0
    %v743 = vadd.f32 %v714, %v742
    %744 = vdwg.mxu0
    %745 = vmatpush.msra.mxu0 %v693
    %746 = vmatpush.msra.mxu0 %v692
    %747 = vmatpush.msra.mxu0 %v691
    %748 = vmatpush.msra.mxu0 %v690
    %749 = vmatpush.msra.mxu0 %v689
    %750 = vmatpush.msra.mxu0 %v688
    %751 = vmatpush.msra.mxu0 %v687
    %752 = vmatpush.msra.mxu0 %v686
    %753 = vmatpush.msra.mxu0 %v685
    %754 = vmatpush.msra.mxu0 %v684
    %755 = vmatpush.msra.mxu0 %v683
    %756 = vmatpush.msra.mxu0 %v682
    %757 = vmatpush.msra.mxu0 %v681
    %758 = vmatpush.msra.mxu0 %v680
    %759 = vmatpush.msra.mxu0 %v679
    %760 = vmatpush.msra.mxu0 %v678
    %761 = vmatmul.f32.gmra.mxu0 %v657
    %v762 = vpop.f32.mrf.mxu0
    %v763 = vadd.f32 %v734, %v762
    %764 = vmatmul.f32.gmra.mxu0 %v658
    %v765 = vpop.f32.mrf.mxu0
    %v766 = vadd.f32 %v737, %v765
    %767 = vmatmul.f32.gmra.mxu0 %v659
    %v768 = vpop.f32.mrf.mxu0
    %v769 = vadd.f32 %v740, %v768
    %770 = vmatmul.f32.gmra.mxu0 %v660
    %v771 = vpop.f32.mrf.mxu0
    %v772 = vadd.f32 %v743, %v771
    %773 = vdwg.mxu0
    %v774 = vmax.f32 %v763, 0.0
    %v775 = vmax.f32 %v766, 0.0
    %v776 = vmax.f32 %v769, 0.0
    %v777 = vmax.f32 %v772, 0.0
    %s778 = scalar_lea.vmem [#allocation2], 1280
    %v779 = vld [vmem:[%s778] sm:$0xff]
    %v780 = vld [vmem:[%s778 + $0x8] sm:$0xff]
    %v781 = vld [vmem:[%s778 + $0x10] sm:$0xff]
    %v782 = vld [vmem:[%s778 + $0x18] sm:$0xff]
    %v783 = vld [vmem:[%s778 + $0x20] sm:$0xff]
    %v784 = vld [vmem:[%s778 + $0x28] sm:$0xff]
    %v785 = vld [vmem:[%s778 + $0x30] sm:$0xff]
    %v786 = vld [vmem:[%s778 + $0x38] sm:$0xff]
    %v787 = vld [vmem:[%s778 + $0x40] sm:$0xff]
    %v788 = vld [vmem:[%s778 + $0x48] sm:$0xff]
    %v789 = vld [vmem:[%s778 + $0x50] sm:$0xff]
    %v790 = vld [vmem:[%s778 + $0x58] sm:$0xff]
    %v791 = vld [vmem:[%s778 + $0x60] sm:$0xff]
    %v792 = vld [vmem:[%s778 + $0x68] sm:$0xff]
    %v793 = vld [vmem:[%s778 + $0x70] sm:$0xff]
    %v794 = vld [vmem:[%s778 + $0x78] sm:$0xff]
    %v795 = vld [vmem:[%s778 + $0x80] sm:$0xff]
    %v796 = vld [vmem:[%s778 + $0x88] sm:$0xff]
    %v797 = vld [vmem:[%s778 + $0x90] sm:$0xff]
    %v798 = vld [vmem:[%s778 + $0x98] sm:$0xff]
    %v799 = vld [vmem:[%s778 + $0xa0] sm:$0xff]
    %v800 = vld [vmem:[%s778 + $0xa8] sm:$0xff]
    %v801 = vld [vmem:[%s778 + $0xb0] sm:$0xff]
    %v802 = vld [vmem:[%s778 + $0xb8] sm:$0xff]
    %v803 = vld [vmem:[%s778 + $0xc0] sm:$0xff]
    %v804 = vld [vmem:[%s778 + $0xc8] sm:$0xff]
    %v805 = vld [vmem:[%s778 + $0xd0] sm:$0xff]
    %v806 = vld [vmem:[%s778 + $0xd8] sm:$0xff]
    %v807 = vld [vmem:[%s778 + $0xe0] sm:$0xff]
    %v808 = vld [vmem:[%s778 + $0xe8] sm:$0xff]
    %v809 = vld [vmem:[%s778 + $0xf0] sm:$0xff]
    %v810 = vld [vmem:[%s778 + $0xf8] sm:$0xff]
    %s811 = scalar_lea.vmem [#allocation4], 5
    %v812 = vld [vmem:[%s811] sm:$0x1]
    %v813 = vrot.slane %v774, 4
    %v814 = vrot.slane %v775, 4
    %v815 = vrot.slane %v776, 4
    %v816 = vrot.slane %v777, 4
    %v817 = vsel %vm700, %v815, %v816
    %v818 = vsel %vm700, %v814, %v815
    %v819 = vsel %vm700, %v813, %v814
    %v820 = vsel %vm700, %v816, %v813
    %v821 = vsel %vm705, 0.0, %v820
    %v822 = vsel %vm706, 0.0, %v819
    %v823 = vsel %vm707, 0.0, %v818
    %v824 = vsel %vm708, 0.0, %v817
    %v826 = vperm.slane %v812, 0
    %828 = vmatpush.msra.mxu0 %v794
    %829 = vmatpush.msra.mxu0 %v793
    %830 = vmatpush.msra.mxu0 %v792
    %831 = vmatpush.msra.mxu0 %v791
    %832 = vmatpush.msra.mxu0 %v790
    %833 = vmatpush.msra.mxu0 %v789
    %834 = vmatpush.msra.mxu0 %v788
    %835 = vmatpush.msra.mxu0 %v787
    %836 = vmatpush.msra.mxu0 %v786
    %837 = vmatpush.msra.mxu0 %v785
    %838 = vmatpush.msra.mxu0 %v784
    %839 = vmatpush.msra.mxu0 %v783
    %840 = vmatpush.msra.mxu0 %v782
    %841 = vmatpush.msra.mxu0 %v781
    %842 = vmatpush.msra.mxu0 %v780
    %843 = vmatpush.msra.mxu0 %v779
    %844 = vmatmul.f32.gmra.mxu0 %v821
    %v845 = vpop.f32.mrf.mxu0
    %v846 = vadd.f32 %v826, %v845
    %847 = vmatmul.f32.gmra.mxu0 %v822
    %v848 = vpop.f32.mrf.mxu0
    %v849 = vadd.f32 %v826, %v848
    %850 = vmatmul.f32.gmra.mxu0 %v823
    %v851 = vpop.f32.mrf.mxu0
    %v852 = vadd.f32 %v826, %v851
    %853 = vmatmul.f32.gmra.mxu0 %v824
    %v854 = vpop.f32.mrf.mxu0
    %v855 = vadd.f32 %v826, %v854
    %856 = vdwg.mxu0
    %857 = vmatpush.msra.mxu0 %v810
    %858 = vmatpush.msra.mxu0 %v809
    %859 = vmatpush.msra.mxu0 %v808
    %860 = vmatpush.msra.mxu0 %v807
    %861 = vmatpush.msra.mxu0 %v806
    %862 = vmatpush.msra.mxu0 %v805
    %863 = vmatpush.msra.mxu0 %v804
    %864 = vmatpush.msra.mxu0 %v803
    %865 = vmatpush.msra.mxu0 %v802
    %866 = vmatpush.msra.mxu0 %v801
    %867 = vmatpush.msra.mxu0 %v800
    %868 = vmatpush.msra.mxu0 %v799
    %869 = vmatpush.msra.mxu0 %v798
    %870 = vmatpush.msra.mxu0 %v797
    %871 = vmatpush.msra.mxu0 %v796
    %872 = vmatpush.msra.mxu0 %v795
    %873 = vmatmul.f32.gmra.mxu0 %v774
    %v874 = vpop.f32.mrf.mxu0
    %v875 = vadd.f32 %v846, %v874
    %876 = vmatmul.f32.gmra.mxu0 %v775
    %v877 = vpop.f32.mrf.mxu0
    %v878 = vadd.f32 %v849, %v877
    %879 = vmatmul.f32.gmra.mxu0 %v776
    %v880 = vpop.f32.mrf.mxu0
    %v881 = vadd.f32 %v852, %v880
    %882 = vmatmul.f32.gmra.mxu0 %v777
    %v883 = vpop.f32.mrf.mxu0
    %v884 = vadd.f32 %v855, %v883
    %885 = vdwg.mxu0
    %v886 = vmax.f32 %v875, 0.0
    %v887 = vmax.f32 %v878, 0.0
    %v888 = vmax.f32 %v881, 0.0
    %v889 = vmax.f32 %v884, 0.0
    %v890 = vadd.f32 %v886, %v657
    %v891 = vadd.f32 %v887, %v658
    %v892 = vadd.f32 %v888, %v659
    %v893 = vadd.f32 %v889, %v660
    %v894 = vmax.f32 %v890, 0.0
    %v895 = vmax.f32 %v891, 0.0
    %v896 = vmax.f32 %v892, 0.0
    %v897 = vmax.f32 %v893, 0.0
    %s898 = scalar_lea.vmem [#allocation2], 1536
    %v899 = vld [vmem:[%s898] sm:$0xff]
    %v900 = vld [vmem:[%s898 + $0x8] sm:$0xff]
    %v901 = vld [vmem:[%s898 + $0x10] sm:$0xff]
    %v902 = vld [vmem:[%s898 + $0x18] sm:$0xff]
    %v903 = vld [vmem:[%s898 + $0x20] sm:$0xff]
    %v904 = vld [vmem:[%s898 + $0x28] sm:$0xff]
    %v905 = vld [vmem:[%s898 + $0x30] sm:$0xff]
    %v906 = vld [vmem:[%s898 + $0x38] sm:$0xff]
    %v907 = vld [vmem:[%s898 + $0x40] sm:$0xff]
    %v908 = vld [vmem:[%s898 + $0x48] sm:$0xff]
    %v909 = vld [vmem:[%s898 + $0x50] sm:$0xff]
    %v910 = vld [vmem:[%s898 + $0x58] sm:$0xff]
    %v911 = vld [vmem:[%s898 + $0x60] sm:$0xff]
    %v912 = vld [vmem:[%s898 + $0x68] sm:$0xff]
    %v913 = vld [vmem:[%s898 + $0x70] sm:$0xff]
    %v914 = vld [vmem:[%s898 + $0x78] sm:$0xff]
    %v915 = vld [vmem:[%s898 + $0x80] sm:$0xff]
    %v916 = vld [vmem:[%s898 + $0x88] sm:$0xff]
    %v917 = vld [vmem:[%s898 + $0x90] sm:$0xff]
    %v918 = vld [vmem:[%s898 + $0x98] sm:$0xff]
    %v919 = vld [vmem:[%s898 + $0xa0] sm:$0xff]
    %v920 = vld [vmem:[%s898 + $0xa8] sm:$0xff]
    %v921 = vld [vmem:[%s898 + $0xb0] sm:$0xff]
    %v922 = vld [vmem:[%s898 + $0xb8] sm:$0xff]
    %v923 = vld [vmem:[%s898 + $0xc0] sm:$0xff]
    %v924 = vld [vmem:[%s898 + $0xc8] sm:$0xff]
    %v925 = vld [vmem:[%s898 + $0xd0] sm:$0xff]
    %v926 = vld [vmem:[%s898 + $0xd8] sm:$0xff]
    %v927 = vld [vmem:[%s898 + $0xe0] sm:$0xff]
    %v928 = vld [vmem:[%s898 + $0xe8] sm:$0xff]
    %v929 = vld [vmem:[%s898 + $0xf0] sm:$0xff]
    %v930 = vld [vmem:[%s898 + $0xf8] sm:$0xff]
    %s931 = scalar_lea.vmem [#allocation4], 6
    %v932 = vld [vmem:[%s931] sm:$0x1]
    %vm933 = vcmp.lt.s32.totalorder %v132, 8
    %vm934 = vcmp.lt.s32.totalorder %v133, 8
    %vm935 = vcmp.lt.s32.totalorder %v134, 8
    %vm936 = vcmp.lt.s32.totalorder %v135, 8
    %v937 = vsel %vm933, 0.0, %v897
    %v938 = vsel %vm934, 0.0, %v894
    %v939 = vsel %vm935, 0.0, %v895
    %v940 = vsel %vm936, 0.0, %v896
    %v942 = vperm.slane %v932, 0
    %944 = vmatpush.msra.mxu0 %v914
    %945 = vmatpush.msra.mxu0 %v913
    %946 = vmatpush.msra.mxu0 %v912
    %947 = vmatpush.msra.mxu0 %v911
    %948 = vmatpush.msra.mxu0 %v910
    %949 = vmatpush.msra.mxu0 %v909
    %950 = vmatpush.msra.mxu0 %v908
    %951 = vmatpush.msra.mxu0 %v907
    %952 = vmatpush.msra.mxu0 %v906
    %953 = vmatpush.msra.mxu0 %v905
    %954 = vmatpush.msra.mxu0 %v904
    %955 = vmatpush.msra.mxu0 %v903
    %956 = vmatpush.msra.mxu0 %v902
    %957 = vmatpush.msra.mxu0 %v901
    %958 = vmatpush.msra.mxu0 %v900
    %959 = vmatpush.msra.mxu0 %v899
    %960 = vmatmul.f32.gmra.mxu0 %v937
    %v961 = vpop.f32.mrf.mxu0
    %v962 = vadd.f32 %v942, %v961
    %963 = vmatmul.f32.gmra.mxu0 %v938
    %v964 = vpop.f32.mrf.mxu0
    %v965 = vadd.f32 %v942, %v964
    %966 = vmatmul.f32.gmra.mxu0 %v939
    %v967 = vpop.f32.mrf.mxu0
    %v968 = vadd.f32 %v942, %v967
    %969 = vmatmul.f32.gmra.mxu0 %v940
    %v970 = vpop.f32.mrf.mxu0
    %v971 = vadd.f32 %v942, %v970
    %972 = vdwg.mxu0
    %973 = vmatpush.msra.mxu0 %v930
    %974 = vmatpush.msra.mxu0 %v929
    %975 = vmatpush.msra.mxu0 %v928
    %976 = vmatpush.msra.mxu0 %v927
    %977 = vmatpush.msra.mxu0 %v926
    %978 = vmatpush.msra.mxu0 %v925
    %979 = vmatpush.msra.mxu0 %v924
    %980 = vmatpush.msra.mxu0 %v923
    %981 = vmatpush.msra.mxu0 %v922
    %982 = vmatpush.msra.mxu0 %v921
    %983 = vmatpush.msra.mxu0 %v920
    %984 = vmatpush.msra.mxu0 %v919
    %985 = vmatpush.msra.mxu0 %v918
    %986 = vmatpush.msra.mxu0 %v917
    %987 = vmatpush.msra.mxu0 %v916
    %988 = vmatpush.msra.mxu0 %v915
    %989 = vmatmul.f32.gmra.mxu0 %v894
    %v990 = vpop.f32.mrf.mxu0
    %v991 = vadd.f32 %v962, %v990
    %992 = vmatmul.f32.gmra.mxu0 %v895
    %v993 = vpop.f32.mrf.mxu0
    %v994 = vadd.f32 %v965, %v993
    %995 = vmatmul.f32.gmra.mxu0 %v896
    %v996 = vpop.f32.mrf.mxu0
    %v997 = vadd.f32 %v968, %v996
    %998 = vmatmul.f32.gmra.mxu0 %v897
    %v999 = vpop.f32.mrf.mxu0
    %v1000 = vadd.f32 %v971, %v999
    %1001 = vdwg.mxu0
    %v1002 = vmax.f32 %v991, 0.0
    %v1003 = vmax.f32 %v994, 0.0
    %v1004 = vmax.f32 %v997, 0.0
    %v1005 = vmax.f32 %v1000, 0.0
    %s1006 = scalar_lea.vmem [#allocation2], 1792
    %v1007 = vld [vmem:[%s1006] sm:$0xff]
    %v1008 = vld [vmem:[%s1006 + $0x8] sm:$0xff]
    %v1009 = vld [vmem:[%s1006 + $0x10] sm:$0xff]
    %v1010 = vld [vmem:[%s1006 + $0x18] sm:$0xff]
    %v1011 = vld [vmem:[%s1006 + $0x20] sm:$0xff]
    %v1012 = vld [vmem:[%s1006 + $0x28] sm:$0xff]
    %v1013 = vld [vmem:[%s1006 + $0x30] sm:$0xff]
    %v1014 = vld [vmem:[%s1006 + $0x38] sm:$0xff]
    %v1015 = vld [vmem:[%s1006 + $0x40] sm:$0xff]
    %v1016 = vld [vmem:[%s1006 + $0x48] sm:$0xff]
    %v1017 = vld [vmem:[%s1006 + $0x50] sm:$0xff]
    %v1018 = vld [vmem:[%s1006 + $0x58] sm:$0xff]
    %v1019 = vld [vmem:[%s1006 + $0x60] sm:$0xff]
    %v1020 = vld [vmem:[%s1006 + $0x68] sm:$0xff]
    %v1021 = vld [vmem:[%s1006 + $0x70] sm:$0xff]
    %v1022 = vld [vmem:[%s1006 + $0x78] sm:$0xff]
    %v1023 = vld [vmem:[%s1006 + $0x80] sm:$0xff]
    %v1024 = vld [vmem:[%s1006 + $0x88] sm:$0xff]
    %v1025 = vld [vmem:[%s1006 + $0x90] sm:$0xff]
    %v1026 = vld [vmem:[%s1006 + $0x98] sm:$0xff]
    %v1027 = vld [vmem:[%s1006 + $0xa0] sm:$0xff]
    %v1028 = vld [vmem:[%s1006 + $0xa8] sm:$0xff]
    %v1029 = vld [vmem:[%s1006 + $0xb0] sm:$0xff]
    %v1030 = vld [vmem:[%s1006 + $0xb8] sm:$0xff]
    %v1031 = vld [vmem:[%s1006 + $0xc0] sm:$0xff]
    %v1032 = vld [vmem:[%s1006 + $0xc8] sm:$0xff]
    %v1033 = vld [vmem:[%s1006 + $0xd0] sm:$0xff]
    %v1034 = vld [vmem:[%s1006 + $0xd8] sm:$0xff]
    %v1035 = vld [vmem:[%s1006 + $0xe0] sm:$0xff]
    %v1036 = vld [vmem:[%s1006 + $0xe8] sm:$0xff]
    %v1037 = vld [vmem:[%s1006 + $0xf0] sm:$0xff]
    %v1038 = vld [vmem:[%s1006 + $0xf8] sm:$0xff]
    %s1039 = scalar_lea.vmem [#allocation4], 7
    %v1040 = vld [vmem:[%s1039] sm:$0x1]
    %v1041 = vsel %vm933, 0.0, %v1005
    %v1042 = vsel %vm934, 0.0, %v1002
    %v1043 = vsel %vm935, 0.0, %v1003
    %v1044 = vsel %vm936, 0.0, %v1004
    %v1046 = vperm.slane %v1040, 0
    %1048 = vmatpush.msra.mxu0 %v1022
    %1049 = vmatpush.msra.mxu0 %v1021
    %1050 = vmatpush.msra.mxu0 %v1020
    %1051 = vmatpush.msra.mxu0 %v1019
    %1052 = vmatpush.msra.mxu0 %v1018
    %1053 = vmatpush.msra.mxu0 %v1017
    %1054 = vmatpush.msra.mxu0 %v1016
    %1055 = vmatpush.msra.mxu0 %v1015
    %1056 = vmatpush.msra.mxu0 %v1014
    %1057 = vmatpush.msra.mxu0 %v1013
    %1058 = vmatpush.msra.mxu0 %v1012
    %1059 = vmatpush.msra.mxu0 %v1011
    %1060 = vmatpush.msra.mxu0 %v1010
    %1061 = vmatpush.msra.mxu0 %v1009
    %1062 = vmatpush.msra.mxu0 %v1008
    %1063 = vmatpush.msra.mxu0 %v1007
    %1064 = vmatmul.f32.gmra.mxu0 %v1041
    %v1065 = vpop.f32.mrf.mxu0
    %v1066 = vadd.f32 %v1046, %v1065
    %1067 = vmatmul.f32.gmra.mxu0 %v1042
    %v1068 = vpop.f32.mrf.mxu0
    %v1069 = vadd.f32 %v1046, %v1068
    %1070 = vmatmul.f32.gmra.mxu0 %v1043
    %v1071 = vpop.f32.mrf.mxu0
    %v1072 = vadd.f32 %v1046, %v1071
    %1073 = vmatmul.f32.gmra.mxu0 %v1044
    %v1074 = vpop.f32.mrf.mxu0
    %v1075 = vadd.f32 %v1046, %v1074
    %1076 = vdwg.mxu0
    %1077 = vmatpush.msra.mxu0 %v1038
    %1078 = vmatpush.msra.mxu0 %v1037
    %1079 = vmatpush.msra.mxu0 %v1036
    %1080 = vmatpush.msra.mxu0 %v1035
    %1081 = vmatpush.msra.mxu0 %v1034
    %1082 = vmatpush.msra.mxu0 %v1033
    %1083 = vmatpush.msra.mxu0 %v1032
    %1084 = vmatpush.msra.mxu0 %v1031
    %1085 = vmatpush.msra.mxu0 %v1030
    %1086 = vmatpush.msra.mxu0 %v1029
    %1087 = vmatpush.msra.mxu0 %v1028
    %1088 = vmatpush.msra.mxu0 %v1027
    %1089 = vmatpush.msra.mxu0 %v1026
    %1090 = vmatpush.msra.mxu0 %v1025
    %1091 = vmatpush.msra.mxu0 %v1024
    %1092 = vmatpush.msra.mxu0 %v1023
    %1093 = vmatmul.f32.gmra.mxu0 %v1002
    %v1094 = vpop.f32.mrf.mxu0
    %v1095 = vadd.f32 %v1066, %v1094
    %1096 = vmatmul.f32.gmra.mxu0 %v1003
    %v1097 = vpop.f32.mrf.mxu0
    %v1098 = vadd.f32 %v1069, %v1097
    %1099 = vmatmul.f32.gmra.mxu0 %v1004
    %v1100 = vpop.f32.mrf.mxu0
    %v1101 = vadd.f32 %v1072, %v1100
    %1102 = vmatmul.f32.gmra.mxu0 %v1005
    %v1103 = vpop.f32.mrf.mxu0
    %v1104 = vadd.f32 %v1075, %v1103
    %1105 = vdwg.mxu0
    %v1106 = vmax.f32 %v1095, 0.0
    %v1107 = vmax.f32 %v1098, 0.0
    %v1108 = vmax.f32 %v1101, 0.0
    %v1109 = vmax.f32 %v1104, 0.0
    %v1110 = vadd.f32 %v1106, %v894
    %v1111 = vadd.f32 %v1107, %v895
    %v1112 = vadd.f32 %v1108, %v896
    %v1113 = vadd.f32 %v1109, %v897
    %v1114 = vmax.f32 %v1110, 0.0
    %v1115 = vmax.f32 %v1111, 0.0
    %v1116 = vmax.f32 %v1112, 0.0
    %v1117 = vmax.f32 %v1113, 0.0
    %s1118 = scalar_lea.vmem [#allocation2], 2048
    %v1119 = vld [vmem:[%s1118 + $0x80] sm:$0xff]
    %v1120 = vld [vmem:[%s1118 + $0x88] sm:$0xff]
    %v1121 = vld [vmem:[%s1118 + $0x90] sm:$0xff]
    %v1122 = vld [vmem:[%s1118 + $0x98] sm:$0xff]
    %v1123 = vld [vmem:[%s1118 + $0xa0] sm:$0xff]
    %v1124 = vld [vmem:[%s1118 + $0xa8] sm:$0xff]
    %v1125 = vld [vmem:[%s1118 + $0xb0] sm:$0xff]
    %v1126 = vld [vmem:[%s1118 + $0xb8] sm:$0xff]
    %v1127 = vld [vmem:[%s1118 + $0xc0] sm:$0xff]
    %v1128 = vld [vmem:[%s1118 + $0xc8] sm:$0xff]
    %v1129 = vld [vmem:[%s1118 + $0xd0] sm:$0xff]
    %v1130 = vld [vmem:[%s1118 + $0xd8] sm:$0xff]
    %v1131 = vld [vmem:[%s1118 + $0xe0] sm:$0xff]
    %v1132 = vld [vmem:[%s1118 + $0xe8] sm:$0xff]
    %v1133 = vld [vmem:[%s1118 + $0xf0] sm:$0xff]
    %v1134 = vld [vmem:[%s1118 + $0xf8] sm:$0xff]
    %s1135 = scalar_lea.vmem [#allocation4], 8
    %v1136 = vld [vmem:[%s1135] sm:$0x1]
    %v1138 = vperm.slane %v1136, 0
    %1140 = vmatpush.msra.mxu0 %v1134
    %1141 = vmatpush.msra.mxu0 %v1133
    %1142 = vmatpush.msra.mxu0 %v1132
    %1143 = vmatpush.msra.mxu0 %v1131
    %1144 = vmatpush.msra.mxu0 %v1130
    %1145 = vmatpush.msra.mxu0 %v1129
    %1146 = vmatpush.msra.mxu0 %v1128
    %1147 = vmatpush.msra.mxu0 %v1127
    %1148 = vmatpush.msra.mxu0 %v1126
    %1149 = vmatpush.msra.mxu0 %v1125
    %1150 = vmatpush.msra.mxu0 %v1124
    %1151 = vmatpush.msra.mxu0 %v1123
    %1152 = vmatpush.msra.mxu0 %v1122
    %1153 = vmatpush.msra.mxu0 %v1121
    %1154 = vmatpush.msra.mxu0 %v1120
    %1155 = vmatpush.msra.mxu0 %v1119
    %1156 = vmatmul.f32.gmra.mxu0 %v1114
    %v1157 = vpop.f32.mrf.mxu0
    %v1158 = vadd.f32 %v1138, %v1157
    %1159 = vmatmul.f32.gmra.mxu0 %v1115
    %v1160 = vpop.f32.mrf.mxu0
    %v1161 = vadd.f32 %v1138, %v1160
    %1162 = vmatmul.f32.gmra.mxu0 %v1116
    %v1163 = vpop.f32.mrf.mxu0
    %v1164 = vadd.f32 %v1138, %v1163
    %1165 = vmatmul.f32.gmra.mxu0 %v1117
    %v1166 = vpop.f32.mrf.mxu0
    %v1167 = vadd.f32 %v1138, %v1166
    %1168 = vdwg.mxu0
    %v1169 = vmax.f32 %v1158, 0.0
    %v1170 = vmax.f32 %v1161, 0.0
    %v1171 = vmax.f32 %v1164, 0.0
    %v1172 = vmax.f32 %v1167, 0.0
    %s1173 = scalar_lea.vmem [#allocation2], 2304
    %v1174 = vld [vmem:[%s1173 + $0x80] sm:$0xff]
    %v1175 = vld [vmem:[%s1173 + $0x88] sm:$0xff]
    %v1176 = vld [vmem:[%s1173 + $0x90] sm:$0xff]
    %v1177 = vld [vmem:[%s1173 + $0x98] sm:$0xff]
    %v1178 = vld [vmem:[%s1173 + $0xa0] sm:$0xff]
    %v1179 = vld [vmem:[%s1173 + $0xa8] sm:$0xff]
    %v1180 = vld [vmem:[%s1173 + $0xb0] sm:$0xff]
    %v1181 = vld [vmem:[%s1173 + $0xb8] sm:$0xff]
    %v1182 = vld [vmem:[%s1173 + $0xc0] sm:$0xff]
    %v1183 = vld [vmem:[%s1173 + $0xc8] sm:$0xff]
    %v1184 = vld [vmem:[%s1173 + $0xd0] sm:$0xff]
    %v1185 = vld [vmem:[%s1173 + $0xd8] sm:$0xff]
    %v1186 = vld [vmem:[%s1173 + $0xe0] sm:$0xff]
    %v1187 = vld [vmem:[%s1173 + $0xe8] sm:$0xff]
    %v1188 = vld [vmem:[%s1173 + $0xf0] sm:$0xff]
    %v1189 = vld [vmem:[%s1173 + $0xf8] sm:$0xff]
    %s1190 = scalar_lea.vmem [#allocation4], 9
    %v1191 = vld [vmem:[%s1190] sm:$0x1]
    %v1193 = vperm.slane %v1191, 0
    %1195 = vmatpush.msra.mxu0 %v1189
    %1196 = vmatpush.msra.mxu0 %v1188
    %1197 = vmatpush.msra.mxu0 %v1187
    %1198 = vmatpush.msra.mxu0 %v1186
    %1199 = vmatpush.msra.mxu0 %v1185
    %1200 = vmatpush.msra.mxu0 %v1184
    %1201 = vmatpush.msra.mxu0 %v1183
    %1202 = vmatpush.msra.mxu0 %v1182
    %1203 = vmatpush.msra.mxu0 %v1181
    %1204 = vmatpush.msra.mxu0 %v1180
    %1205 = vmatpush.msra.mxu0 %v1179
    %1206 = vmatpush.msra.mxu0 %v1178
    %1207 = vmatpush.msra.mxu0 %v1177
    %1208 = vmatpush.msra.mxu0 %v1176
    %1209 = vmatpush.msra.mxu0 %v1175
    %1210 = vmatpush.msra.mxu0 %v1174
    %1211 = vmatmul.f32.gmra.mxu0 %v1169
    %v1212 = vpop.f32.mrf.mxu0
    %v1213 = vadd.f32 %v1193, %v1212
    %1214 = vmatmul.f32.gmra.mxu0 %v1170
    %v1215 = vpop.f32.mrf.mxu0
    %v1216 = vadd.f32 %v1193, %v1215
    %1217 = vmatmul.f32.gmra.mxu0 %v1171
    %v1218 = vpop.f32.mrf.mxu0
    %v1219 = vadd.f32 %v1193, %v1218
    %1220 = vmatmul.f32.gmra.mxu0 %v1172
    %v1221 = vpop.f32.mrf.mxu0
    %v1222 = vadd.f32 %v1193, %v1221
    %1223 = vdwg.mxu0
    %v1224 = vmax.f32 %v1213, 0.0
    %v1225 = vmax.f32 %v1216, 0.0
    %v1226 = vmax.f32 %v1219, 0.0
    %v1227 = vmax.f32 %v1222, 0.0
    %v1228 = vadd.f32 %v1224, %v1114
    %v1229 = vadd.f32 %v1225, %v1115
    %v1230 = vadd.f32 %v1226, %v1116
    %v1231 = vadd.f32 %v1227, %v1117
    %v1232 = vmax.f32 %v1228, 0.0
    %v1233 = vmax.f32 %v1229, 0.0
    %v1234 = vmax.f32 %v1230, 0.0
    %v1235 = vmax.f32 %v1231, 0.0
    %s1236 = scalar_lea.vmem [#allocation2], 2560
    %v1237 = vld [vmem:[%s1236 + $0x80] sm:$0xff]
    %v1238 = vld [vmem:[%s1236 + $0x88] sm:$0xff]
    %v1239 = vld [vmem:[%s1236 + $0x90] sm:$0xff]
    %v1240 = vld [vmem:[%s1236 + $0x98] sm:$0xff]
    %v1241 = vld [vmem:[%s1236 + $0xa0] sm:$0xff]
    %v1242 = vld [vmem:[%s1236 + $0xa8] sm:$0xff]
    %v1243 = vld [vmem:[%s1236 + $0xb0] sm:$0xff]
    %v1244 = vld [vmem:[%s1236 + $0xb8] sm:$0xff]
    %v1245 = vld [vmem:[%s1236 + $0xc0] sm:$0xff]
    %v1246 = vld [vmem:[%s1236 + $0xc8] sm:$0xff]
    %v1247 = vld [vmem:[%s1236 + $0xd0] sm:$0xff]
    %v1248 = vld [vmem:[%s1236 + $0xd8] sm:$0xff]
    %v1249 = vld [vmem:[%s1236 + $0xe0] sm:$0xff]
    %v1250 = vld [vmem:[%s1236 + $0xe8] sm:$0xff]
    %v1251 = vld [vmem:[%s1236 + $0xf0] sm:$0xff]
    %v1252 = vld [vmem:[%s1236 + $0xf8] sm:$0xff]
    %s1253 = scalar_lea.vmem [#allocation4], 10
    %v1254 = vld [vmem:[%s1253] sm:$0x1]
    %v1256 = vperm.slane %v1254, 0
    %1258 = vmatpush.msra.mxu0 %v1252
    %1259 = vmatpush.msra.mxu0 %v1251
    %1260 = vmatpush.msra.mxu0 %v1250
    %1261 = vmatpush.msra.mxu0 %v1249
    %1262 = vmatpush.msra.mxu0 %v1248
    %1263 = vmatpush.msra.mxu0 %v1247
    %1264 = vmatpush.msra.mxu0 %v1246
    %1265 = vmatpush.msra.mxu0 %v1245
    %1266 = vmatpush.msra.mxu0 %v1244
    %1267 = vmatpush.msra.mxu0 %v1243
    %1268 = vmatpush.msra.mxu0 %v1242
    %1269 = vmatpush.msra.mxu0 %v1241
    %1270 = vmatpush.msra.mxu0 %v1240
    %1271 = vmatpush.msra.mxu0 %v1239
    %1272 = vmatpush.msra.mxu0 %v1238
    %1273 = vmatpush.msra.mxu0 %v1237
    %1274 = vmatmul.f32.gmra.mxu0 %v1232
    %v1275 = vpop.f32.mrf.mxu0
    %v1276 = vadd.f32 %v1256, %v1275
    %1277 = vmatmul.f32.gmra.mxu0 %v1233
    %v1278 = vpop.f32.mrf.mxu0
    %v1279 = vadd.f32 %v1256, %v1278
    %1280 = vmatmul.f32.gmra.mxu0 %v1234
    %v1281 = vpop.f32.mrf.mxu0
    %v1282 = vadd.f32 %v1256, %v1281
    %1283 = vmatmul.f32.gmra.mxu0 %v1235
    %v1284 = vpop.f32.mrf.mxu0
    %v1285 = vadd.f32 %v1256, %v1284
    %1286 = vdwg.mxu0
    %v1287 = vmax.f32 %v1276, 0.0
    %v1288 = vmax.f32 %v1279, 0.0
    %v1289 = vmax.f32 %v1282, 0.0
    %v1290 = vmax.f32 %v1285, 0.0
    %s1291 = scalar_lea.vmem [#allocation2], 2816
    %v1292 = vld [vmem:[%s1291 + $0x80] sm:$0xff]
    %v1293 = vld [vmem:[%s1291 + $0x88] sm:$0xff]
    %v1294 = vld [vmem:[%s1291 + $0x90] sm:$0xff]
    %v1295 = vld [vmem:[%s1291 + $0x98] sm:$0xff]
    %v1296 = vld [vmem:[%s1291 + $0xa0] sm:$0xff]
    %v1297 = vld [vmem:[%s1291 + $0xa8] sm:$0xff]
    %v1298 = vld [vmem:[%s1291 + $0xb0] sm:$0xff]
    %v1299 = vld [vmem:[%s1291 + $0xb8] sm:$0xff]
    %v1300 = vld [vmem:[%s1291 + $0xc0] sm:$0xff]
    %v1301 = vld [vmem:[%s1291 + $0xc8] sm:$0xff]
    %v1302 = vld [vmem:[%s1291 + $0xd0] sm:$0xff]
    %v1303 = vld [vmem:[%s1291 + $0xd8] sm:$0xff]
    %v1304 = vld [vmem:[%s1291 + $0xe0] sm:$0xff]
    %v1305 = vld [vmem:[%s1291 + $0xe8] sm:$0xff]
    %v1306 = vld [vmem:[%s1291 + $0xf0] sm:$0xff]
    %v1307 = vld [vmem:[%s1291 + $0xf8] sm:$0xff]
    %s1308 = scalar_lea.vmem [#allocation4], 11
    %v1309 = vld [vmem:[%s1308] sm:$0x1]
    %v1311 = vperm.slane %v1309, 0
    %1313 = vmatpush.msra.mxu0 %v1307
    %1314 = vmatpush.msra.mxu0 %v1306
    %1315 = vmatpush.msra.mxu0 %v1305
    %1316 = vmatpush.msra.mxu0 %v1304
    %1317 = vmatpush.msra.mxu0 %v1303
    %1318 = vmatpush.msra.mxu0 %v1302
    %1319 = vmatpush.msra.mxu0 %v1301
    %1320 = vmatpush.msra.mxu0 %v1300
    %1321 = vmatpush.msra.mxu0 %v1299
    %1322 = vmatpush.msra.mxu0 %v1298
    %1323 = vmatpush.msra.mxu0 %v1297
    %1324 = vmatpush.msra.mxu0 %v1296
    %1325 = vmatpush.msra.mxu0 %v1295
    %1326 = vmatpush.msra.mxu0 %v1294
    %1327 = vmatpush.msra.mxu0 %v1293
    %1328 = vmatpush.msra.mxu0 %v1292
    %1329 = vmatmul.f32.gmra.mxu0 %v1287
    %v1330 = vpop.f32.mrf.mxu0
    %v1331 = vadd.f32 %v1311, %v1330
    %1332 = vmatmul.f32.gmra.mxu0 %v1288
    %v1333 = vpop.f32.mrf.mxu0
    %v1334 = vadd.f32 %v1311, %v1333
    %1335 = vmatmul.f32.gmra.mxu0 %v1289
    %v1336 = vpop.f32.mrf.mxu0
    %v1337 = vadd.f32 %v1311, %v1336
    %1338 = vmatmul.f32.gmra.mxu0 %v1290
    %v1339 = vpop.f32.mrf.mxu0
    %v1340 = vadd.f32 %v1311, %v1339
    %1341 = vdwg.mxu0
    %v1342 = vmax.f32 %v1331, 0.0
    %v1343 = vmax.f32 %v1334, 0.0
    %v1344 = vmax.f32 %v1337, 0.0
    %v1345 = vmax.f32 %v1340, 0.0
    %v1346 = vadd.f32 %v1342, %v1232
    %v1347 = vadd.f32 %v1343, %v1233
    %v1348 = vadd.f32 %v1344, %v1234
    %v1349 = vadd.f32 %v1345, %v1235
    %v1350 = vmax.f32 %v1346, 0.0
    %v1351 = vmax.f32 %v1347, 0.0
    %v1352 = vmax.f32 %v1348, 0.0
    %v1353 = vmax.f32 %v1349, 0.0
    %s1354 = scalar_lea.vmem [#allocation6], 128
    %v1355 = vld [vmem:[%s1354] sm:$0xff]
    %v1356 = vld [vmem:[%s1354 + $0x8] sm:$0xff]
    %v1357 = vld [vmem:[%s1354 + $0x10] sm:$0xff]
    %v1358 = vld [vmem:[%s1354 + $0x18] sm:$0xff]
    %v1359 = vld [vmem:[%s1354 + $0x20] sm:$0xff]
    %v1360 = vld [vmem:[%s1354 + $0x28] sm:$0xff]
    %v1361 = vld [vmem:[%s1354 + $0x30] sm:$0xff]
    %v1362 = vld [vmem:[%s1354 + $0x38] sm:$0xff]
    %v1363 = vld [vmem:[%s1354 + $0x40] sm:$0xff]
    %v1364 = vld [vmem:[%s1354 + $0x48] sm:$0xff]
    %v1365 = vld [vmem:[%s1354 + $0x50] sm:$0xff]
    %v1366 = vld [vmem:[%s1354 + $0x58] sm:$0xff]
    %v1367 = vld [vmem:[%s1354 + $0x60] sm:$0xff]
    %v1368 = vld [vmem:[%s1354 + $0x68] sm:$0xff]
    %v1369 = vld [vmem:[%s1354 + $0x70] sm:$0xff]
    %v1370 = vld [vmem:[%s1354 + $0x78] sm:$0xff]
    %s1371 = scalar_lea.vmem [#allocation7], 1
    %v1372 = vld [vmem:[%s1371] sm:$0x1]
    %v1374 = vperm.slane %v1372, 0
    %1376 = vmatpush.msra.mxu0 %v1370
    %1377 = vmatpush.msra.mxu0 %v1369
    %1378 = vmatpush.msra.mxu0 %v1368
    %1379 = vmatpush.msra.mxu0 %v1367
    %1380 = vmatpush.msra.mxu0 %v1366
    %1381 = vmatpush.msra.mxu0 %v1365
    %1382 = vmatpush.msra.mxu0 %v1364
    %1383 = vmatpush.msra.mxu0 %v1363
    %1384 = vmatpush.msra.mxu0 %v1362
    %1385 = vmatpush.msra.mxu0 %v1361
    %1386 = vmatpush.msra.mxu0 %v1360
    %1387 = vmatpush.msra.mxu0 %v1359
    %1388 = vmatpush.msra.mxu0 %v1358
    %1389 = vmatpush.msra.mxu0 %v1357
    %1390 = vmatpush.msra.mxu0 %v1356
    %1391 = vmatpush.msra.mxu0 %v1355
    %1392 = vmatmul.f32.gmra.mxu0 %v1350
    %v1393 = vpop.f32.mrf.mxu0
    %v1394 = vadd.f32 %v1374, %v1393
    %1395 = vmatmul.f32.gmra.mxu0 %v1351
    %v1396 = vpop.f32.mrf.mxu0
    %v1397 = vadd.f32 %v1374, %v1396
    %1398 = vmatmul.f32.gmra.mxu0 %v1352
    %v1399 = vpop.f32.mrf.mxu0
    %v1400 = vadd.f32 %v1374, %v1399
    %1401 = vmatmul.f32.gmra.mxu0 %v1353
    %v1402 = vpop.f32.mrf.mxu0
    %v1403 = vadd.f32 %v1374, %v1402
    %1404 = vdwg.mxu0
    %v1405 = vmax.f32 %v1394, 0.0
    %v1406 = vmax.f32 %v1397, 0.0
    %v1407 = vmax.f32 %v1400, 0.0
    %v1408 = vmax.f32 %v1403, 0.0
    %s1409 = scalar_lea.vmem [#allocation6], 256
    %v1410 = vld [vmem:[%s1409] sm:$0xff]
    %v1411 = vld [vmem:[%s1409 + $0x8] sm:$0xff]
    %v1412 = vld [vmem:[%s1409 + $0x10] sm:$0xff]
    %v1413 = vld [vmem:[%s1409 + $0x18] sm:$0xff]
    %v1414 = vld [vmem:[%s1409 + $0x20] sm:$0xff]
    %v1415 = vld [vmem:[%s1409 + $0x28] sm:$0xff]
    %v1416 = vld [vmem:[%s1409 + $0x30] sm:$0xff]
    %v1417 = vld [vmem:[%s1409 + $0x38] sm:$0xff]
    %v1418 = vld [vmem:[%s1409 + $0x40] sm:$0xff]
    %v1419 = vld [vmem:[%s1409 + $0x48] sm:$0xff]
    %v1420 = vld [vmem:[%s1409 + $0x50] sm:$0xff]
    %v1421 = vld [vmem:[%s1409 + $0x58] sm:$0xff]
    %v1422 = vld [vmem:[%s1409 + $0x60] sm:$0xff]
    %v1423 = vld [vmem:[%s1409 + $0x68] sm:$0xff]
    %v1424 = vld [vmem:[%s1409 + $0x70] sm:$0xff]
    %v1425 = vld [vmem:[%s1409 + $0x78] sm:$0xff]
    %s1426 = scalar_lea.vmem [#allocation7], 2
    %v1427 = vld [vmem:[%s1426] sm:$0x1]
    %v1429 = vperm.slane %v1427, 0
    %1431 = vmatpush.msra.mxu0 %v1425
    %1432 = vmatpush.msra.mxu0 %v1424
    %1433 = vmatpush.msra.mxu0 %v1423
    %1434 = vmatpush.msra.mxu0 %v1422
    %1435 = vmatpush.msra.mxu0 %v1421
    %1436 = vmatpush.msra.mxu0 %v1420
    %1437 = vmatpush.msra.mxu0 %v1419
    %1438 = vmatpush.msra.mxu0 %v1418
    %1439 = vmatpush.msra.mxu0 %v1417
    %1440 = vmatpush.msra.mxu0 %v1416
    %1441 = vmatpush.msra.mxu0 %v1415
    %1442 = vmatpush.msra.mxu0 %v1414
    %1443 = vmatpush.msra.mxu0 %v1413
    %1444 = vmatpush.msra.mxu0 %v1412
    %1445 = vmatpush.msra.mxu0 %v1411
    %1446 = vmatpush.msra.mxu0 %v1410
    %1447 = vmatmul.f32.gmra.mxu0 %v1405
    %v1448 = vpop.f32.mrf.mxu0
    %v1449 = vadd.f32 %v1429, %v1448
    %1450 = vmatmul.f32.gmra.mxu0 %v1406
    %v1451 = vpop.f32.mrf.mxu0
    %v1452 = vadd.f32 %v1429, %v1451
    %1453 = vmatmul.f32.gmra.mxu0 %v1407
    %v1454 = vpop.f32.mrf.mxu0
    %v1455 = vadd.f32 %v1429, %v1454
    %1456 = vmatmul.f32.gmra.mxu0 %v1408
    %v1457 = vpop.f32.mrf.mxu0
    %v1458 = vadd.f32 %v1429, %v1457
    %1459 = vdwg.mxu0
    %1460 = vst [vmem:[%s5] sm:$0xff] %v1449
    %1461 = vst [vmem:[%s5 + $0x8] sm:$0xff] %v1452
    %1462 = vst [vmem:[%s5 + $0x10] sm:$0xff] %v1455
    %1463 = vst [vmem:[%s5 + $0x18] sm:$0xff] %v1458
    // Predicated region
    $region38: #{tcn_forward.1} parent=1 // pred_check
      _
    $region39: #{tcn_forward.1} parent=1 // pred_check_branch
      %1465 = sbr.rel (0) target = $region41
    $region40: #{tcn_forward.1} parent=1 // pred_region
      _
    $region41: #{tcn_forward.1} parent=1 // pred_fallthru
      _
    // Predicated region
    $region42: #{tcn_forward.1} parent=1 // pred_check
      _
    $region43: #{tcn_forward.1} parent=1 // pred_check_branch
      %1467 = sbr.rel (0) target = $region45
    $region44: #{tcn_forward.1} parent=1 // pred_region
      _
    $region45: #{tcn_forward.1} parent=1 // pred_fallthru
      _
    %1468 = vsyncpa [#allocation3], 1
    %1469 = vsyncpa [#allocation5], 1
    %1470 = vsyncpa [#allocation8], 1

</llo_original>
